<compile_context>
chip_gen: v7x
topology: tpu7x:2x2x1
jax: 0.10.0
libtpu: 0.0.40
codegen_flags: <defaults>
</compile_context>

<pallas_src>
import functools
import math

import jax
import jax.numpy as jnp
from jax import lax
from jax.experimental import pallas as pl
from jax.experimental.pallas import tpu as pltpu


def _rnn_kernel(x_ref, h0_ref, w_ref, y_ref, hn_ref, buf_sc, *,
                T, Bp, Ip, H, O,
                r_whh0, r_wih1, r_whh1, r_wfc, r_bias):
    # ---- Hoisted weight/bias loads: static slices of the packed slab, done
    #      once outside the unrolled recurrence.
    wih0 = w_ref[0:Ip, 0:H]                       # (Ip, H)
    whh0 = w_ref[r_whh0:r_whh0 + H, 0:H]          # (H, H)
    wih1 = w_ref[r_wih1:r_wih1 + H, 0:H]          # (H, H)
    whh1 = w_ref[r_whh1:r_whh1 + H, 0:H]          # (H, H)
    wfc = w_ref[r_wfc:r_wfc + H, :]               # (H, Wl)  padded cols are zero
    b0 = w_ref[r_bias:r_bias + 1, 0:H]            # (1, H)
    b1v = jnp.broadcast_to(
        w_ref[r_bias + 1:r_bias + 2, 0:H], (Bp, H))   # hoisted, reused every step
    bfc = w_ref[r_bias + 2:r_bias + 3, :]         # (1, Wl)

    # ---- Prologue: layer-0 input projection for ALL timesteps (one MXU op).
    #      buf[t*Bp:(t+1)*Bp] = x_t @ W_ih0^T + (b_ih0 + b_hh0)
    buf_sc[...] = (
        jnp.dot(x_ref[...], wih0, preferred_element_type=jnp.float32) + b0)

    h1_0 = h0_ref[0].astype(jnp.float32)   # (Bp, H)
    h2_0 = h0_ref[1].astype(jnp.float32)   # (Bp, H)

    def step(t, carry):
        h1_prev, h2_prev = carry
        row = pl.multiple_of(t * Bp, Bp)   # sublane-aligned slice start

        # Layer-1 recurrent dot depends only on the previous step's h2, so the
        # scheduler can overlap it with layer-0 + tanh below.
        rec2 = jnp.dot(h2_prev, whh1, preferred_element_type=jnp.float32)

        # Layer 0: only the recurrent matmul remains on the serial path.
        pre1 = buf_sc[pl.ds(row, Bp), :] + jnp.dot(
            h1_prev, whh0, preferred_element_type=jnp.float32)
        h1 = jnp.tanh(pre1)

        # Layer 1: two separate dots (no lane-axis concatenate).
        pre2 = jnp.dot(h1, wih1, preferred_element_type=jnp.float32) + rec2 + b1v
        h2 = jnp.tanh(pre2)

        # Overwrite the already-consumed xproj rows with h2_t (scratch aliasing)
        # for the batched FC head epilogue.
        buf_sc[pl.ds(row, Bp), :] = h2
        return (h1, h2)

    h1_f, h2_f = lax.fori_loop(0, T, step, (h1_0, h2_0), unroll=True)

    # ---- Epilogue: batched FC head over all timesteps, single write-back.
    #      Padded wfc/bfc columns are zero, so padded y columns are zero.
    y_ref[...] = (
        jnp.dot(buf_sc[...], wfc, preferred_element_type=jnp.float32)
        + bfc).astype(y_ref.dtype)

    # Final hidden states written exactly once.
    hn_ref[0] = h1_f.astype(hn_ref.dtype)
    hn_ref[1] = h2_f.astype(hn_ref.dtype)


def my_rnn_forward(data, last_hidden, params):
    """Pallas forward pass equivalent to MyRNN.forward (inference semantics).

    data:        (T, B, input_size) float32
    last_hidden: (num_layers=2, B, hidden_size) float32
    returns (y, h_n): (T, B, output_size), (2, B, hidden_size)
    """
    T, B, I = data.shape
    L, _, H = last_hidden.shape
    assert L == 2
    O = params["fc_w"].shape[0]

    def rup(n, m=8):
        return ((n + m - 1) // m) * m

    Bp, Ip, Hp = rup(B), rup(I), rup(H)
    Wl = max(H, O)  # common lane width of the packed weight slab / y output

    # Pad batch (sublane alignment of per-step slices) and input features
    # (so the W_ih0 block in the slab keeps an 8-row-aligned height).
    data_p = jnp.pad(data, ((0, 0), (0, Bp - B), (0, Ip - I)))
    h0_p = (jnp.pad(last_hidden, ((0, 0), (0, Bp - B), (0, 0)))
            if Bp != B else last_hidden)
    x2d = data_p.reshape(T * Bp, Ip)

    def pad_block(a, rows, cols=Wl):
        r, c = a.shape
        return jnp.pad(a, ((0, rows - r), (0, cols - c)))

    # ---- Pack all weights/biases into ONE sublane-aligned fp32 slab so the
    #      kernel sees a single small input DMA instead of seven tiny ones.
    r_wih0 = 0
    r_whh0 = r_wih0 + Ip
    r_wih1 = r_whh0 + Hp
    r_whh1 = r_wih1 + Hp
    r_wfc = r_whh1 + Hp
    r_bias = r_wfc + Hp
    rtot = r_bias + 8

    b0 = (params["b_ih_l0"] + params["b_hh_l0"]).reshape(1, H)
    b1 = (params["b_ih_l1"] + params["b_hh_l1"]).reshape(1, H)
    bfc = params["fc_b"].reshape(1, O)
    bias_block = jnp.concatenate(
        [pad_block(b0, 1), pad_block(b1, 1), pad_block(bfc, 1)], axis=0)
    bias_block = jnp.pad(bias_block, ((0, 8 - 3), (0, 0)))

    w_slab = jnp.concatenate([
        pad_block(params["w_ih_l0"].T, Ip),   # (I, H)  -> (Ip, Wl)
        pad_block(params["w_hh_l0"].T, Hp),   # (H, H)  -> (Hp, Wl)
        pad_block(params["w_ih_l1"].T, Hp),   # (H, H)  -> (Hp, Wl)
        pad_block(params["w_hh_l1"].T, Hp),   # (H, H)  -> (Hp, Wl)
        pad_block(params["fc_w"].T, Hp),      # (H, O)  -> (Hp, Wl)
        bias_block,                           # (8, Wl): b0 / b1 / bfc rows
    ], axis=0).astype(jnp.float32)
    assert w_slab.shape == (rtot, Wl)

    kernel = functools.partial(
        _rnn_kernel, T=T, Bp=Bp, Ip=Ip, H=H, O=O,
        r_whh0=r_whh0, r_wih1=r_wih1, r_whh1=r_whh1, r_wfc=r_wfc, r_bias=r_bias)

    y2d, h_n_p = pl.pallas_call(
        kernel,
        out_shape=(
            jax.ShapeDtypeStruct((T * Bp, Wl), jnp.float32),
            jax.ShapeDtypeStruct((L, Bp, H), jnp.float32),
        ),
        grid_spec=pltpu.PrefetchScalarGridSpec(
            num_scalar_prefetch=0,
            grid=(1,),                                           # single step
            in_specs=[
                pl.BlockSpec((T * Bp, Ip), lambda i: (0, 0)),    # x (flattened)
                pl.BlockSpec((L, Bp, H), lambda i: (0, 0, 0)),   # h0
                pl.BlockSpec((rtot, Wl), lambda i: (0, 0)),      # packed weights
            ],
            out_specs=[
                pl.BlockSpec((T * Bp, Wl), lambda i: (0, 0)),    # y (flattened)
                pl.BlockSpec((L, Bp, H), lambda i: (0, 0, 0)),   # h_n
            ],
            scratch_shapes=[
                # Aliased: layer-0 input projection, overwritten per-step by h2.
                pltpu.VMEM((T * Bp, H), jnp.float32),
            ],
        ),
        compiler_params=pltpu.CompilerParams(
            dimension_semantics=("arbitrary",)),
    )(x2d, h0_p, w_slab)

    y = y2d.reshape(T, Bp, Wl)[:, :B, :O]
    h_n = h_n_p[:, :B, :]
    return y, h_n


def _reference_forward(data, last_hidden, params):
    """Pure-JAX reference of the same inference-mode forward pass."""
    T = data.shape[0]
    h1 = last_hidden[0]
    h2 = last_hidden[1]
    ys = []
    for t in range(T):
        x_t = data[t]
        h1 = jnp.tanh(x_t @ params["w_ih_l0"].T + params["b_ih_l0"]
                      + h1 @ params["w_hh_l0"].T + params["b_hh_l0"])
        h2 = jnp.tanh(h1 @ params["w_ih_l1"].T + params["b_ih_l1"]
                      + h2 @ params["w_hh_l1"].T + params["b_hh_l1"])
        ys.append(h2 @ params["fc_w"].T + params["fc_b"])
    y = jnp.stack(ys, axis=0)
    h_n = jnp.stack([h1, h2], axis=0)
    return y, h_n


def _init_params(key, input_size, hidden_size, output_size):
    """Deterministic parameter init mirroring PyTorch's U(-1/sqrt(H), 1/sqrt(H))."""
    keys = jax.random.split(key, 10)
    k = 1.0 / math.sqrt(hidden_size)

    def u(kk, shape):
        return jax.random.uniform(kk, shape, jnp.float32, minval=-k, maxval=k)

    return {
        "w_ih_l0": u(keys[0], (hidden_size, input_size)),
        "w_hh_l0": u(keys[1], (hidden_size, hidden_size)),
        "b_ih_l0": u(keys[2], (hidden_size,)),
        "b_hh_l0": u(keys[3], (hidden_size,)),
        "w_ih_l1": u(keys[4], (hidden_size, hidden_size)),
        "w_hh_l1": u(keys[5], (hidden_size, hidden_size)),
        "b_ih_l1": u(keys[6], (hidden_size,)),
        "b_hh_l1": u(keys[7], (hidden_size,)),
        "fc_w": u(keys[8], (output_size, hidden_size)),
        "fc_b": u(keys[9], (output_size,)),
    }


if __name__ == "__main__":
    seq_len = 8
    batch = 2
    input_size = 16
    hidden_size = 8
    num_layers = 2
    output_size = 4

    key = jax.random.PRNGKey(0)
    k_data, k_hid, k_params = jax.random.split(key, 3)

    data = jax.random.normal(k_data, (seq_len, batch, input_size), jnp.float32)
    last_hidden = jax.random.normal(k_hid, (num_layers, batch, hidden_size),
                                    jnp.float32)
    params = _init_params(k_params, input_size, hidden_size, output_size)

    y, h_n = my_rnn_forward(data, last_hidden, params)
    y = jax.block_until_ready(y)
    h_n = jax.block_until_ready(h_n)

    y_ref, h_ref = _reference_forward(data, last_hidden, params)
    assert jnp.allclose(y, y_ref, atol=1e-5, rtol=1e-5)
    assert jnp.allclose(h_n, h_ref, atol=1e-5, rtol=1e-5)

    print("KERNEL_OK")
</pallas_src>

<mosaic_0001>
module attributes {stable_mosaic.version = 11 : i64} {
  func.func @_rnn_kernel(%arg0: i32, %arg1: memref<64x16xf32, #tpu.memory_space<vmem>>, %arg2: memref<2x8x8xf32, #tpu.memory_space<vmem>>, %arg3: memref<56x8xf32, #tpu.memory_space<vmem>>, %arg4: memref<64x8xf32, #tpu.memory_space<vmem>>, %arg5: memref<2x8x8xf32, #tpu.memory_space<vmem>>, %arg6: memref<64x8xf32, #tpu.memory_space<vmem>>) attributes {dimension_semantics = [#tpu.dimension_semantics<arbitrary>], iteration_bounds = array<i64: 1>, scalar_prefetch = 0 : i64, scratch_operands = 1 : i64, tpu.core_type = #tpu.core_type<tc>, window_params = [{pipeline_mode = #tpu.pipeline_mode<synchronous>, transform_indices = @transform_0, window_bounds = array<i64: 64, 16>}, {pipeline_mode = #tpu.pipeline_mode<synchronous>, transform_indices = @transform_1, window_bounds = array<i64: 2, 8, 8>}, {pipeline_mode = #tpu.pipeline_mode<synchronous>, transform_indices = @transform_2, window_bounds = array<i64: 56, 8>}, {pipeline_mode = #tpu.pipeline_mode<synchronous>, transform_indices = @transform_3, window_bounds = array<i64: 64, 8>}, {pipeline_mode = #tpu.pipeline_mode<synchronous>, transform_indices = @transform_4, window_bounds = array<i64: 2, 8, 8>}]} {
    %c0 = arith.constant 0 : index
    %c0_0 = arith.constant 0 : index
    %0 = vector.load %arg3[%c0, %c0_0] : memref<56x8xf32, #tpu.memory_space<vmem>>, vector<16x8xf32>
    %c16 = arith.constant 16 : index
    %c0_1 = arith.constant 0 : index
    %1 = vector.load %arg3[%c16, %c0_1] : memref<56x8xf32, #tpu.memory_space<vmem>>, vector<8x8xf32>
    %c24 = arith.constant 24 : index
    %c0_2 = arith.constant 0 : index
    %2 = vector.load %arg3[%c24, %c0_2] : memref<56x8xf32, #tpu.memory_space<vmem>>, vector<8x8xf32>
    %c32 = arith.constant 32 : index
    %c0_3 = arith.constant 0 : index
    %3 = vector.load %arg3[%c32, %c0_3] : memref<56x8xf32, #tpu.memory_space<vmem>>, vector<8x8xf32>
    %c40 = arith.constant 40 : index
    %c0_4 = arith.constant 0 : index
    %4 = vector.load %arg3[%c40, %c0_4] : memref<56x8xf32, #tpu.memory_space<vmem>>, vector<8x8xf32>
    %c48 = arith.constant 48 : index
    %c0_5 = arith.constant 0 : index
    %5 = vector.load %arg3[%c48, %c0_5] : memref<56x8xf32, #tpu.memory_space<vmem>>, vector<1x8xf32>
    %c49 = arith.constant 49 : index
    %c0_6 = arith.constant 0 : index
    %6 = vector.load %arg3[%c49, %c0_6] : memref<56x8xf32, #tpu.memory_space<vmem>>, vector<1x8xf32>
    %7 = vector.shape_cast %6 : vector<1x8xf32> to vector<1x8xf32>
    %8 = vector.broadcast %7 : vector<1x8xf32> to vector<8x8xf32>
    %c50 = arith.constant 50 : index
    %c0_7 = arith.constant 0 : index
    %9 = vector.load %arg3[%c50, %c0_7] : memref<56x8xf32, #tpu.memory_space<vmem>>, vector<1x8xf32>
    %c0_8 = arith.constant 0 : index
    %c0_9 = arith.constant 0 : index
    %10 = vector.load %arg1[%c0_8, %c0_9] : memref<64x16xf32, #tpu.memory_space<vmem>>, vector<64x16xf32>
    %cst = arith.constant dense<0.000000e+00> : vector<64x8xf32>
    %11 = tpu.matmul %10, %0, %cst {dimension_numbers = #tpu.dot_dimension_numbers<[1], [0], [0], [1], [0, 0, 1, 1], [], []>} : vector<64x16xf32>, vector<16x8xf32>, vector<64x8xf32> -> vector<64x8xf32>
    %12 = vector.broadcast %5 : vector<1x8xf32> to vector<64x8xf32>
    %13 = arith.addf %11, %12 : vector<64x8xf32>
    %c0_10 = arith.constant 0 : index
    %c0_11 = arith.constant 0 : index
    %14 = vector.load %arg6[%c0_10, %c0_11] : memref<64x8xf32, #tpu.memory_space<vmem>>, vector<64x8xf32>
    tpu.vector_store %arg6[%c0_10, %c0_11], %13 {strides = array<i32>} : memref<64x8xf32, #tpu.memory_space<vmem>>, vector<64x8xf32>,
    %c0_12 = arith.constant 0 : index
    %c0_13 = arith.constant 0 : index
    %c0_14 = arith.constant 0 : index
    %15 = vector.load %arg2[%c0_12, %c0_13, %c0_14] : memref<2x8x8xf32, #tpu.memory_space<vmem>>, vector<1x8x8xf32>
    %16 = vector.shape_cast %15 : vector<1x8x8xf32> to vector<8x8xf32>
    %c1 = arith.constant 1 : index
    %c0_15 = arith.constant 0 : index
    %c0_16 = arith.constant 0 : index
    %17 = vector.load %arg2[%c1, %c0_15, %c0_16] : memref<2x8x8xf32, #tpu.memory_space<vmem>>, vector<1x8x8xf32>
    %18 = vector.shape_cast %17 : vector<1x8x8xf32> to vector<8x8xf32>
    %c0_i32 = arith.constant 0 : i32
    %c8_i32 = arith.constant 8 : i32
    %19 = arith.muli %c0_i32, %c8_i32 : i32
    %20 = tpu.assume_multiple %19, 8 : i32
    %cst_17 = arith.constant dense<0.000000e+00> : vector<8x8xf32>
    %21 = tpu.matmul %18, %3, %cst_17 {dimension_numbers = #tpu.dot_dimension_numbers<[1], [0], [0], [1], [0, 0, 1, 1], [], []>} : vector<8x8xf32>, vector<8x8xf32>, vector<8x8xf32> -> vector<8x8xf32>
    %22 = arith.index_cast %20 : i32 to index
    %c0_18 = arith.constant 0 : index
    %23 = vector.load %arg6[%22, %c0_18] : memref<64x8xf32, #tpu.memory_space<vmem>>, vector<8x8xf32>
    %cst_19 = arith.constant dense<0.000000e+00> : vector<8x8xf32>
    %24 = tpu.matmul %16, %1, %cst_19 {dimension_numbers = #tpu.dot_dimension_numbers<[1], [0], [0], [1], [0, 0, 1, 1], [], []>} : vector<8x8xf32>, vector<8x8xf32>, vector<8x8xf32> -> vector<8x8xf32>
    %25 = arith.addf %23, %24 : vector<8x8xf32>
    %26 = math.tanh %25 : vector<8x8xf32>
    %cst_20 = arith.constant dense<0.000000e+00> : vector<8x8xf32>
    %27 = tpu.matmul %26, %2, %cst_20 {dimension_numbers = #tpu.dot_dimension_numbers<[1], [0], [0], [1], [0, 0, 1, 1], [], []>} : vector<8x8xf32>, vector<8x8xf32>, vector<8x8xf32> -> vector<8x8xf32>
    %28 = arith.addf %27, %21 : vector<8x8xf32>
    %29 = arith.addf %28, %8 : vector<8x8xf32>
    %30 = math.tanh %29 : vector<8x8xf32>
    %31 = arith.index_cast %20 : i32 to index
    %c0_21 = arith.constant 0 : index
    %32 = vector.load %arg6[%31, %c0_21] : memref<64x8xf32, #tpu.memory_space<vmem>>, vector<8x8xf32>
    tpu.vector_store %arg6[%31, %c0_21], %30 {strides = array<i32>} : memref<64x8xf32, #tpu.memory_space<vmem>>, vector<8x8xf32>,
    %c1_i32 = arith.constant 1 : i32
    %c8_i32_22 = arith.constant 8 : i32
    %33 = arith.muli %c1_i32, %c8_i32_22 : i32
    %34 = tpu.assume_multiple %33, 8 : i32
    %cst_23 = arith.constant dense<0.000000e+00> : vector<8x8xf32>
    %35 = tpu.matmul %30, %3, %cst_23 {dimension_numbers = #tpu.dot_dimension_numbers<[1], [0], [0], [1], [0, 0, 1, 1], [], []>} : vector<8x8xf32>, vector<8x8xf32>, vector<8x8xf32> -> vector<8x8xf32>
    %36 = arith.index_cast %34 : i32 to index
    %c0_24 = arith.constant 0 : index
    %37 = vector.load %arg6[%36, %c0_24] : memref<64x8xf32, #tpu.memory_space<vmem>>, vector<8x8xf32>
    %cst_25 = arith.constant dense<0.000000e+00> : vector<8x8xf32>
    %38 = tpu.matmul %26, %1, %cst_25 {dimension_numbers = #tpu.dot_dimension_numbers<[1], [0], [0], [1], [0, 0, 1, 1], [], []>} : vector<8x8xf32>, vector<8x8xf32>, vector<8x8xf32> -> vector<8x8xf32>
    %39 = arith.addf %37, %38 : vector<8x8xf32>
    %40 = math.tanh %39 : vector<8x8xf32>
    %cst_26 = arith.constant dense<0.000000e+00> : vector<8x8xf32>
    %41 = tpu.matmul %40, %2, %cst_26 {dimension_numbers = #tpu.dot_dimension_numbers<[1], [0], [0], [1], [0, 0, 1, 1], [], []>} : vector<8x8xf32>, vector<8x8xf32>, vector<8x8xf32> -> vector<8x8xf32>
    %42 = arith.addf %41, %35 : vector<8x8xf32>
    %43 = arith.addf %42, %8 : vector<8x8xf32>
    %44 = math.tanh %43 : vector<8x8xf32>
    %45 = arith.index_cast %34 : i32 to index
    %c0_27 = arith.constant 0 : index
    %46 = vector.load %arg6[%45, %c0_27] : memref<64x8xf32, #tpu.memory_space<vmem>>, vector<8x8xf32>
    tpu.vector_store %arg6[%45, %c0_27], %44 {strides = array<i32>} : memref<64x8xf32, #tpu.memory_space<vmem>>, vector<8x8xf32>,
    %c2_i32 = arith.constant 2 : i32
    %c8_i32_28 = arith.constant 8 : i32
    %47 = arith.muli %c2_i32, %c8_i32_28 : i32
    %48 = tpu.assume_multiple %47, 8 : i32
    %cst_29 = arith.constant dense<0.000000e+00> : vector<8x8xf32>
    %49 = tpu.matmul %44, %3, %cst_29 {dimension_numbers = #tpu.dot_dimension_numbers<[1], [0], [0], [1], [0, 0, 1, 1], [], []>} : vector<8x8xf32>, vector<8x8xf32>, vector<8x8xf32> -> vector<8x8xf32>
    %50 = arith.index_cast %48 : i32 to index
    %c0_30 = arith.constant 0 : index
    %51 = vector.load %arg6[%50, %c0_30] : memref<64x8xf32, #tpu.memory_space<vmem>>, vector<8x8xf32>
    %cst_31 = arith.constant dense<0.000000e+00> : vector<8x8xf32>
    %52 = tpu.matmul %40, %1, %cst_31 {dimension_numbers = #tpu.dot_dimension_numbers<[1], [0], [0], [1], [0, 0, 1, 1], [], []>} : vector<8x8xf32>, vector<8x8xf32>, vector<8x8xf32> -> vector<8x8xf32>
    %53 = arith.addf %51, %52 : vector<8x8xf32>
    %54 = math.tanh %53 : vector<8x8xf32>
    %cst_32 = arith.constant dense<0.000000e+00> : vector<8x8xf32>
    %55 = tpu.matmul %54, %2, %cst_32 {dimension_numbers = #tpu.dot_dimension_numbers<[1], [0], [0], [1], [0, 0, 1, 1], [], []>} : vector<8x8xf32>, vector<8x8xf32>, vector<8x8xf32> -> vector<8x8xf32>
    %56 = arith.addf %55, %49 : vector<8x8xf32>
    %57 = arith.addf %56, %8 : vector<8x8xf32>
    %58 = math.tanh %57 : vector<8x8xf32>
    %59 = arith.index_cast %48 : i32 to index
    %c0_33 = arith.constant 0 : index
    %60 = vector.load %arg6[%59, %c0_33] : memref<64x8xf32, #tpu.memory_space<vmem>>, vector<8x8xf32>
    tpu.vector_store %arg6[%59, %c0_33], %58 {strides = array<i32>} : memref<64x8xf32, #tpu.memory_space<vmem>>, vector<8x8xf32>,
    %c3_i32 = arith.constant 3 : i32
    %c8_i32_34 = arith.constant 8 : i32
    %61 = arith.muli %c3_i32, %c8_i32_34 : i32
    %62 = tpu.assume_multiple %61, 8 : i32
    %cst_35 = arith.constant dense<0.000000e+00> : vector<8x8xf32>
    %63 = tpu.matmul %58, %3, %cst_35 {dimension_numbers = #tpu.dot_dimension_numbers<[1], [0], [0], [1], [0, 0, 1, 1], [], []>} : vector<8x8xf32>, vector<8x8xf32>, vector<8x8xf32> -> vector<8x8xf32>
    %64 = arith.index_cast %62 : i32 to index
    %c0_36 = arith.constant 0 : index
    %65 = vector.load %arg6[%64, %c0_36] : memref<64x8xf32, #tpu.memory_space<vmem>>, vector<8x8xf32>
    %cst_37 = arith.constant dense<0.000000e+00> : vector<8x8xf32>
    %66 = tpu.matmul %54, %1, %cst_37 {dimension_numbers = #tpu.dot_dimension_numbers<[1], [0], [0], [1], [0, 0, 1, 1], [], []>} : vector<8x8xf32>, vector<8x8xf32>, vector<8x8xf32> -> vector<8x8xf32>
    %67 = arith.addf %65, %66 : vector<8x8xf32>
    %68 = math.tanh %67 : vector<8x8xf32>
    %cst_38 = arith.constant dense<0.000000e+00> : vector<8x8xf32>
    %69 = tpu.matmul %68, %2, %cst_38 {dimension_numbers = #tpu.dot_dimension_numbers<[1], [0], [0], [1], [0, 0, 1, 1], [], []>} : vector<8x8xf32>, vector<8x8xf32>, vector<8x8xf32> -> vector<8x8xf32>
    %70 = arith.addf %69, %63 : vector<8x8xf32>
    %71 = arith.addf %70, %8 : vector<8x8xf32>
    %72 = math.tanh %71 : vector<8x8xf32>
    %73 = arith.index_cast %62 : i32 to index
    %c0_39 = arith.constant 0 : index
    %74 = vector.load %arg6[%73, %c0_39] : memref<64x8xf32, #tpu.memory_space<vmem>>, vector<8x8xf32>
    tpu.vector_store %arg6[%73, %c0_39], %72 {strides = array<i32>} : memref<64x8xf32, #tpu.memory_space<vmem>>, vector<8x8xf32>,
    %c4_i32 = arith.constant 4 : i32
    %c8_i32_40 = arith.constant 8 : i32
    %75 = arith.muli %c4_i32, %c8_i32_40 : i32
    %76 = tpu.assume_multiple %75, 8 : i32
    %cst_41 = arith.constant dense<0.000000e+00> : vector<8x8xf32>
    %77 = tpu.matmul %72, %3, %cst_41 {dimension_numbers = #tpu.dot_dimension_numbers<[1], [0], [0], [1], [0, 0, 1, 1], [], []>} : vector<8x8xf32>, vector<8x8xf32>, vector<8x8xf32> -> vector<8x8xf32>
    %78 = arith.index_cast %76 : i32 to index
    %c0_42 = arith.constant 0 : index
    %79 = vector.load %arg6[%78, %c0_42] : memref<64x8xf32, #tpu.memory_space<vmem>>, vector<8x8xf32>
    %cst_43 = arith.constant dense<0.000000e+00> : vector<8x8xf32>
    %80 = tpu.matmul %68, %1, %cst_43 {dimension_numbers = #tpu.dot_dimension_numbers<[1], [0], [0], [1], [0, 0, 1, 1], [], []>} : vector<8x8xf32>, vector<8x8xf32>, vector<8x8xf32> -> vector<8x8xf32>
    %81 = arith.addf %79, %80 : vector<8x8xf32>
    %82 = math.tanh %81 : vector<8x8xf32>
    %cst_44 = arith.constant dense<0.000000e+00> : vector<8x8xf32>
    %83 = tpu.matmul %82, %2, %cst_44 {dimension_numbers = #tpu.dot_dimension_numbers<[1], [0], [0], [1], [0, 0, 1, 1], [], []>} : vector<8x8xf32>, vector<8x8xf32>, vector<8x8xf32> -> vector<8x8xf32>
    %84 = arith.addf %83, %77 : vector<8x8xf32>
    %85 = arith.addf %84, %8 : vector<8x8xf32>
    %86 = math.tanh %85 : vector<8x8xf32>
    %87 = arith.index_cast %76 : i32 to index
    %c0_45 = arith.constant 0 : index
    %88 = vector.load %arg6[%87, %c0_45] : memref<64x8xf32, #tpu.memory_space<vmem>>, vector<8x8xf32>
    tpu.vector_store %arg6[%87, %c0_45], %86 {strides = array<i32>} : memref<64x8xf32, #tpu.memory_space<vmem>>, vector<8x8xf32>,
    %c5_i32 = arith.constant 5 : i32
    %c8_i32_46 = arith.constant 8 : i32
    %89 = arith.muli %c5_i32, %c8_i32_46 : i32
    %90 = tpu.assume_multiple %89, 8 : i32
    %cst_47 = arith.constant dense<0.000000e+00> : vector<8x8xf32>
    %91 = tpu.matmul %86, %3, %cst_47 {dimension_numbers = #tpu.dot_dimension_numbers<[1], [0], [0], [1], [0, 0, 1, 1], [], []>} : vector<8x8xf32>, vector<8x8xf32>, vector<8x8xf32> -> vector<8x8xf32>
    %92 = arith.index_cast %90 : i32 to index
    %c0_48 = arith.constant 0 : index
    %93 = vector.load %arg6[%92, %c0_48] : memref<64x8xf32, #tpu.memory_space<vmem>>, vector<8x8xf32>
    %cst_49 = arith.constant dense<0.000000e+00> : vector<8x8xf32>
    %94 = tpu.matmul %82, %1, %cst_49 {dimension_numbers = #tpu.dot_dimension_numbers<[1], [0], [0], [1], [0, 0, 1, 1], [], []>} : vector<8x8xf32>, vector<8x8xf32>, vector<8x8xf32> -> vector<8x8xf32>
    %95 = arith.addf %93, %94 : vector<8x8xf32>
    %96 = math.tanh %95 : vector<8x8xf32>
    %cst_50 = arith.constant dense<0.000000e+00> : vector<8x8xf32>
    %97 = tpu.matmul %96, %2, %cst_50 {dimension_numbers = #tpu.dot_dimension_numbers<[1], [0], [0], [1], [0, 0, 1, 1], [], []>} : vector<8x8xf32>, vector<8x8xf32>, vector<8x8xf32> -> vector<8x8xf32>
    %98 = arith.addf %97, %91 : vector<8x8xf32>
    %99 = arith.addf %98, %8 : vector<8x8xf32>
    %100 = math.tanh %99 : vector<8x8xf32>
    %101 = arith.index_cast %90 : i32 to index
    %c0_51 = arith.constant 0 : index
    %102 = vector.load %arg6[%101, %c0_51] : memref<64x8xf32, #tpu.memory_space<vmem>>, vector<8x8xf32>
    tpu.vector_store %arg6[%101, %c0_51], %100 {strides = array<i32>} : memref<64x8xf32, #tpu.memory_space<vmem>>, vector<8x8xf32>,
    %c6_i32 = arith.constant 6 : i32
    %c8_i32_52 = arith.constant 8 : i32
    %103 = arith.muli %c6_i32, %c8_i32_52 : i32
    %104 = tpu.assume_multiple %103, 8 : i32
    %cst_53 = arith.constant dense<0.000000e+00> : vector<8x8xf32>
    %105 = tpu.matmul %100, %3, %cst_53 {dimension_numbers = #tpu.dot_dimension_numbers<[1], [0], [0], [1], [0, 0, 1, 1], [], []>} : vector<8x8xf32>, vector<8x8xf32>, vector<8x8xf32> -> vector<8x8xf32>
    %106 = arith.index_cast %104 : i32 to index
    %c0_54 = arith.constant 0 : index
    %107 = vector.load %arg6[%106, %c0_54] : memref<64x8xf32, #tpu.memory_space<vmem>>, vector<8x8xf32>
    %cst_55 = arith.constant dense<0.000000e+00> : vector<8x8xf32>
    %108 = tpu.matmul %96, %1, %cst_55 {dimension_numbers = #tpu.dot_dimension_numbers<[1], [0], [0], [1], [0, 0, 1, 1], [], []>} : vector<8x8xf32>, vector<8x8xf32>, vector<8x8xf32> -> vector<8x8xf32>
    %109 = arith.addf %107, %108 : vector<8x8xf32>
    %110 = math.tanh %109 : vector<8x8xf32>
    %cst_56 = arith.constant dense<0.000000e+00> : vector<8x8xf32>
    %111 = tpu.matmul %110, %2, %cst_56 {dimension_numbers = #tpu.dot_dimension_numbers<[1], [0], [0], [1], [0, 0, 1, 1], [], []>} : vector<8x8xf32>, vector<8x8xf32>, vector<8x8xf32> -> vector<8x8xf32>
    %112 = arith.addf %111, %105 : vector<8x8xf32>
    %113 = arith.addf %112, %8 : vector<8x8xf32>
    %114 = math.tanh %113 : vector<8x8xf32>
    %115 = arith.index_cast %104 : i32 to index
    %c0_57 = arith.constant 0 : index
    %116 = vector.load %arg6[%115, %c0_57] : memref<64x8xf32, #tpu.memory_space<vmem>>, vector<8x8xf32>
    tpu.vector_store %arg6[%115, %c0_57], %114 {strides = array<i32>} : memref<64x8xf32, #tpu.memory_space<vmem>>, vector<8x8xf32>,
    %c7_i32 = arith.constant 7 : i32
    %c8_i32_58 = arith.constant 8 : i32
    %117 = arith.muli %c7_i32, %c8_i32_58 : i32
    %118 = tpu.assume_multiple %117, 8 : i32
    %cst_59 = arith.constant dense<0.000000e+00> : vector<8x8xf32>
    %119 = tpu.matmul %114, %3, %cst_59 {dimension_numbers = #tpu.dot_dimension_numbers<[1], [0], [0], [1], [0, 0, 1, 1], [], []>} : vector<8x8xf32>, vector<8x8xf32>, vector<8x8xf32> -> vector<8x8xf32>
    %120 = arith.index_cast %118 : i32 to index
    %c0_60 = arith.constant 0 : index
    %121 = vector.load %arg6[%120, %c0_60] : memref<64x8xf32, #tpu.memory_space<vmem>>, vector<8x8xf32>
    %cst_61 = arith.constant dense<0.000000e+00> : vector<8x8xf32>
    %122 = tpu.matmul %110, %1, %cst_61 {dimension_numbers = #tpu.dot_dimension_numbers<[1], [0], [0], [1], [0, 0, 1, 1], [], []>} : vector<8x8xf32>, vector<8x8xf32>, vector<8x8xf32> -> vector<8x8xf32>
    %123 = arith.addf %121, %122 : vector<8x8xf32>
    %124 = math.tanh %123 : vector<8x8xf32>
    %cst_62 = arith.constant dense<0.000000e+00> : vector<8x8xf32>
    %125 = tpu.matmul %124, %2, %cst_62 {dimension_numbers = #tpu.dot_dimension_numbers<[1], [0], [0], [1], [0, 0, 1, 1], [], []>} : vector<8x8xf32>, vector<8x8xf32>, vector<8x8xf32> -> vector<8x8xf32>
    %126 = arith.addf %125, %119 : vector<8x8xf32>
    %127 = arith.addf %126, %8 : vector<8x8xf32>
    %128 = math.tanh %127 : vector<8x8xf32>
    %129 = arith.index_cast %118 : i32 to index
    %c0_63 = arith.constant 0 : index
    %130 = vector.load %arg6[%129, %c0_63] : memref<64x8xf32, #tpu.memory_space<vmem>>, vector<8x8xf32>
    tpu.vector_store %arg6[%129, %c0_63], %128 {strides = array<i32>} : memref<64x8xf32, #tpu.memory_space<vmem>>, vector<8x8xf32>,
    %c8_i32_64 = arith.constant 8 : i32
    %c0_65 = arith.constant 0 : index
    %c0_66 = arith.constant 0 : index
    %131 = vector.load %arg6[%c0_65, %c0_66] : memref<64x8xf32, #tpu.memory_space<vmem>>, vector<64x8xf32>
    %cst_67 = arith.constant dense<0.000000e+00> : vector<64x8xf32>
    %132 = tpu.matmul %131, %4, %cst_67 {dimension_numbers = #tpu.dot_dimension_numbers<[1], [0], [0], [1], [0, 0, 1, 1], [], []>} : vector<64x8xf32>, vector<8x8xf32>, vector<64x8xf32> -> vector<64x8xf32>
    %133 = vector.broadcast %9 : vector<1x8xf32> to vector<64x8xf32>
    %134 = arith.addf %132, %133 : vector<64x8xf32>
    %c0_68 = arith.constant 0 : index
    %c0_69 = arith.constant 0 : index
    %135 = vector.load %arg4[%c0_68, %c0_69] : memref<64x8xf32, #tpu.memory_space<vmem>>, vector<64x8xf32>
    tpu.vector_store %arg4[%c0_68, %c0_69], %134 {strides = array<i32>} : memref<64x8xf32, #tpu.memory_space<vmem>>, vector<64x8xf32>,
    %c0_70 = arith.constant 0 : index
    %c0_71 = arith.constant 0 : index
    %c0_72 = arith.constant 0 : index
    %136 = vector.load %arg5[%c0_70, %c0_71, %c0_72] : memref<2x8x8xf32, #tpu.memory_space<vmem>>, vector<1x8x8xf32>
    %137 = vector.shape_cast %136 : vector<1x8x8xf32> to vector<8x8xf32>
    %138 = vector.shape_cast %124 : vector<8x8xf32> to vector<1x8x8xf32>
    tpu.vector_store %arg5[%c0_70, %c0_71, %c0_72], %138 {strides = array<i32>} : memref<2x8x8xf32, #tpu.memory_space<vmem>>, vector<1x8x8xf32>,
    %c1_73 = arith.constant 1 : index
    %c0_74 = arith.constant 0 : index
    %c0_75 = arith.constant 0 : index
    %139 = vector.load %arg5[%c1_73, %c0_74, %c0_75] : memref<2x8x8xf32, #tpu.memory_space<vmem>>, vector<1x8x8xf32>
    %140 = vector.shape_cast %139 : vector<1x8x8xf32> to vector<8x8xf32>
    %141 = vector.shape_cast %128 : vector<8x8xf32> to vector<1x8x8xf32>
    tpu.vector_store %arg5[%c1_73, %c0_74, %c0_75], %141 {strides = array<i32>} : memref<2x8x8xf32, #tpu.memory_space<vmem>>, vector<1x8x8xf32>,
    return
  }
  func.func @transform_0(%arg0: i32) -> (i32, i32) {
    %c0_i32 = arith.constant 0 : i32
    %c0_i32_0 = arith.constant 0 : i32
    %c0_i32_1 = arith.constant 0 : i32
    return %c0_i32, %c0_i32_0 : i32, i32
  }
  func.func @transform_1(%arg0: i32) -> (i32, i32, i32) {
    %c0_i32 = arith.constant 0 : i32
    %c0_i32_0 = arith.constant 0 : i32
    %c0_i32_1 = arith.constant 0 : i32
    %c0_i32_2 = arith.constant 0 : i32
    return %c0_i32, %c0_i32_0, %c0_i32_1 : i32, i32, i32
  }
  func.func @transform_2(%arg0: i32) -> (i32, i32) {
    %c0_i32 = arith.constant 0 : i32
    %c0_i32_0 = arith.constant 0 : i32
    %c0_i32_1 = arith.constant 0 : i32
    return %c0_i32, %c0_i32_0 : i32, i32
  }
  func.func @transform_3(%arg0: i32) -> (i32, i32) {
    %c0_i32 = arith.constant 0 : i32
    %c0_i32_0 = arith.constant 0 : i32
    %c0_i32_1 = arith.constant 0 : i32
    return %c0_i32, %c0_i32_0 : i32, i32
  }
  func.func @transform_4(%arg0: i32) -> (i32, i32, i32) {
    %c0_i32 = arith.constant 0 : i32
    %c0_i32_0 = arith.constant 0 : i32
    %c0_i32_1 = arith.constant 0 : i32
    %c0_i32_2 = arith.constant 0 : i32
    return %c0_i32, %c0_i32_0, %c0_i32_1 : i32, i32, i32
  }
}

</mosaic_0001>

<llo_original>
// kernel: tpu_custom_call.1
$region0: #{tpu_custom_call.1}
  #allocation0 [shape = 'u32[]', space=smem, size = 0x4, offset = 0x4, fixed_abs, tag = 'smem constant byte address 0x4 - core index']
  #allocation1 [shape = 'u32[144,128]{1,0:T(1,128)}', space=vmem, size = 0x12000, scoped, tag = 'internal scratch']
  #allocation2 [shape = 'f32[64,8]{1,0:T(8,128)}', space=vmem, size = 0x8000, scoped, tag = 'scratch operand']
  %s0 = inlined_call_operand.vmem [shape: f32[64,16], index: 0, kind: input, shape index: {}]
  %s1 = inlined_call_operand.vmem [shape: f32[2,8,8], index: 1, kind: input, shape index: {}]
  %s2 = inlined_call_operand.vmem [shape: f32[56,8], index: 2, kind: input, shape index: {}]
  %s3 = inlined_call_operand.vmem [shape: f32[64,8], index: 3, kind: output, shape index: {0}]
  %s4 = inlined_call_operand.hbm [shape: f32[2,8,8], index: 4, kind: output, shape index: {1}]
  %5 = xla_tuple %s3, %s4
  %s6 = sld [smem:[#allocation0]]
  $region30: #{tpu_custom_call.1} parent=0
    _
  %s8 = ssub.s32 1, %s6
  %s9 = scalar_select 0, %s8, %s6
  $region1: #{tpu_custom_call.1} parent=0
    #allocation3 [shape = 'u8[8192]{0}', space=vmem, size = 0x2000, scoped, tag = 'output window, operand 1, single buffered']
    #allocation4 [shape = 's32[1]{0}', space=sflag, size = 0x4, scoped, tag = 'scoped memory for tpu_custom_call.1']
    %10 = vsyncpa [#allocation4], 0
    // Predicated region
    $region2: #{tpu_custom_call.1} parent=1 // pred_check
      _
    $region3: #{tpu_custom_call.1} parent=1 // pred_check_branch
      %12 = sbr.rel (0) target = $region5
    $region4: #{tpu_custom_call.1} parent=1 // pred_region
      _
    $region5: #{tpu_custom_call.1} parent=1 // pred_fallthru
      _
    // Predicated region
    $region6: #{tpu_custom_call.1} parent=1 // pred_check
      _
    $region7: #{tpu_custom_call.1} parent=1 // pred_check_branch
      %14 = sbr.rel (0) target = $region9
    $region8: #{tpu_custom_call.1} parent=1 // pred_region
      _
    $region9: #{tpu_custom_call.1} parent=1 // pred_fallthru
      _
    // Predicated region
    $region10: #{tpu_custom_call.1} parent=1 // pred_check
      _
    $region11: #{tpu_custom_call.1} parent=1 // pred_check_branch
      %16 = sbr.rel (0) target = $region13
    $region12: #{tpu_custom_call.1} parent=1 // pred_region
      _
    $region13: #{tpu_custom_call.1} parent=1 // pred_fallthru
      _
    %v17 = vld [vmem:[%s2] sm:$0xff]
    %v18 = vld [vmem:[%s2 + $0x8] sm:$0xff]
    %v19 = vld [vmem:[%s2 + $0x10] sm:$0xff]
    %v20 = vld [vmem:[%s2 + $0x18] sm:$0xff]
    %v21 = vld [vmem:[%s2 + $0x20] sm:$0xff]
    %v22 = vld [vmem:[%s2 + $0x28] sm:$0xff]
    %v23 = vld [vmem:[%s2 + $0x30] sm:$0x1]
    %v24 = vld [vmem:[%s2 + $0x31] sm:$0x1]
    %v25 = vlaneseq
    %v26 = vshrl.u32 %v25, 7
    %v27 = vsub.s32 0, %v26
    %v28 = vrot.slane %v24, %v27
    %v29 = vld [vmem:[%s2 + $0x32] sm:$0x1]
    %v30 = vld [vmem:[%s0] sm:$0xff]
    %v31 = vld [vmem:[%s0 + $0x8] sm:$0xff]
    %v32 = vld [vmem:[%s0 + $0x10] sm:$0xff]
    %v33 = vld [vmem:[%s0 + $0x18] sm:$0xff]
    %v34 = vld [vmem:[%s0 + $0x20] sm:$0xff]
    %v35 = vld [vmem:[%s0 + $0x28] sm:$0xff]
    %v36 = vld [vmem:[%s0 + $0x30] sm:$0xff]
    %v37 = vld [vmem:[%s0 + $0x38] sm:$0xff]
    %v38 = vlaneseq
    %v39 = vshrl.u32 %v38, 7
    %v40 = vsub.s32 0, %v39
    %v41 = vrot.slane %v23, %v40
    %vm42 = vcmask 130048
    %v44 = vsel %vm42, %v30, 0
    %v47 = vsel %vm42, %v31, 0
    %v50 = vsel %vm42, %v32, 0
    %v53 = vsel %vm42, %v33, 0
    %v56 = vsel %vm42, %v34, 0
    %v59 = vsel %vm42, %v35, 0
    %v62 = vsel %vm42, %v36, 0
    %v65 = vsel %vm42, %v37, 0
    %67 = vmatprep.subr.mxu0 0.0
    %68 = vmatpush1.msra.mxu0 %v17
    %69 = vmatprep.subr.mxu0 0.0
    %70 = vmatpush1.msra.mxu0 %v18
    %71 = vmatprep.subr.mxu0 0.0
    %72 = vmatpush1.msra.mxu0 0.0
    %73 = vmatprep.subr.mxu0 0.0
    %74 = vmatpush1.msra.mxu0 0.0
    %75 = vmatprep.subr.mxu0 0.0
    %76 = vmatpush1.msra.mxu0 0.0
    %77 = vmatprep.subr.mxu0 0.0
    %78 = vmatpush1.msra.mxu0 0.0
    %79 = vmatprep.subr.mxu0 0.0
    %80 = vmatpush1.msra.mxu0 0.0
    %81 = vmatprep.subr.mxu0 0.0
    %82 = vmatpush1.msra.mxu0 0.0
    %83 = vmatprep.subr.mxu0 0.0
    %84 = vmatpush1.msra.mxu0 0.0
    %85 = vmatprep.subr.mxu0 0.0
    %86 = vmatpush1.msra.mxu0 0.0
    %87 = vmatprep.subr.mxu0 0.0
    %88 = vmatpush1.msra.mxu0 0.0
    %89 = vmatprep.subr.mxu0 0.0
    %90 = vmatpush1.msra.mxu0 0.0
    %91 = vmatprep.subr.mxu0 0.0
    %92 = vmatpush1.msra.mxu0 0.0
    %93 = vmatprep.subr.mxu0 0.0
    %94 = vmatpush1.msra.mxu0 0.0
    %95 = vmatprep.subr.mxu0 0.0
    %96 = vmatpush1.msra.mxu0 0.0
    %97 = vmatprep.subr.mxu0 0.0
    %98 = vmatpush1.msra.mxu0 0.0
    %99 = vmatprep.subr.mxu0 0.0
    %100 = vmatpush1.msra.mxu0 0.0
    %101 = vmatprep.subr.mxu0 0.0
    %102 = vmatpush1.msra.mxu0 0.0
    %103 = vmatprep.subr.mxu0 0.0
    %104 = vmatpush1.msra.mxu0 0.0
    %105 = vmatprep.subr.mxu0 0.0
    %106 = vmatpush1.msra.mxu0 0.0
    %107 = vmatprep.subr.mxu0 0.0
    %108 = vmatpush1.msra.mxu0 0.0
    %109 = vmatprep.subr.mxu0 0.0
    %110 = vmatpush1.msra.mxu0 0.0
    %111 = vmatprep.subr.mxu0 0.0
    %112 = vmatpush1.msra.mxu0 0.0
    %113 = vmatprep.subr.mxu0 0.0
    %114 = vmatpush1.msra.mxu0 0.0
    %115 = vmatprep.subr.mxu0 0.0
    %116 = vmatpush1.msra.mxu0 0.0
    %117 = vmatprep.subr.mxu0 0.0
    %118 = vmatpush1.msra.mxu0 0.0
    %119 = vmatprep.subr.mxu0 0.0
    %120 = vmatpush1.msra.mxu0 0.0
    %121 = vmatprep.subr.mxu0 0.0
    %122 = vmatpush1.msra.mxu0 0.0
    %123 = vmatprep.subr.mxu0 0.0
    %124 = vmatpush1.msra.mxu0 0.0
    %125 = vmatprep.subr.mxu0 0.0
    %126 = vmatpush1.msra.mxu0 0.0
    %127 = vmatprep.subr.mxu0 0.0
    %128 = vmatpush1.msra.mxu0 0.0
    %129 = vmatprep.subr.mxu0 0.0
    %130 = vmatpush1.msra.mxu0 0.0
    %131 = vmatprep.mubr.f32.mxu0 0.0
    %132 = vmatmul.mubr.f32.gmra.mrb[0].mxu0 %v44
    %v133 = vpop.f32.mrb[0].mxu0
    %v134 = vadd.f32 %v41, %v133
    %v135 = vpop.f32.mrb[0].mxu0
    %136 = vmatprep.mubr.f32.mxu0 0.0
    %137 = vmatmul.mubr.f32.gmra.mrb[0].mxu0 %v47
    %v138 = vpop.f32.mrb[0].mxu0
    %v139 = vadd.f32 %v41, %v138
    %v140 = vpop.f32.mrb[0].mxu0
    %141 = vmatprep.mubr.f32.mxu0 0.0
    %142 = vmatmul.mubr.f32.gmra.mrb[0].mxu0 %v50
    %v143 = vpop.f32.mrb[0].mxu0
    %v144 = vadd.f32 %v41, %v143
    %v145 = vpop.f32.mrb[0].mxu0
    %146 = vmatprep.mubr.f32.mxu0 0.0
    %147 = vmatmul.mubr.f32.gmra.mrb[0].mxu0 %v53
    %v148 = vpop.f32.mrb[0].mxu0
    %v149 = vadd.f32 %v41, %v148
    %v150 = vpop.f32.mrb[0].mxu0
    %151 = vmatprep.mubr.f32.mxu0 0.0
    %152 = vmatmul.mubr.f32.gmra.mrb[0].mxu0 %v56
    %v153 = vpop.f32.mrb[0].mxu0
    %v154 = vadd.f32 %v41, %v153
    %v155 = vpop.f32.mrb[0].mxu0
    %156 = vmatprep.mubr.f32.mxu0 0.0
    %157 = vmatmul.mubr.f32.gmra.mrb[0].mxu0 %v59
    %v158 = vpop.f32.mrb[0].mxu0
    %v159 = vadd.f32 %v41, %v158
    %v160 = vpop.f32.mrb[0].mxu0
    %161 = vmatprep.mubr.f32.mxu0 0.0
    %162 = vmatmul.mubr.f32.gmra.mrb[0].mxu0 %v62
    %v163 = vpop.f32.mrb[0].mxu0
    %v164 = vadd.f32 %v41, %v163
    %v165 = vpop.f32.mrb[0].mxu0
    %166 = vmatprep.mubr.f32.mxu0 0.0
    %167 = vmatmul.mubr.f32.gmra.mrb[0].mxu0 %v65
    %v168 = vpop.f32.mrb[0].mxu0
    %v169 = vadd.f32 %v41, %v168
    %v170 = vpop.f32.mrb[0].mxu0
    %171 = vdwg.mxu0
    %vm172 = vcmask 64512
    %173 = vst.msk [vmem:[#allocation2] sm:$0xff] %vm172, %v134
    %174 = vst.msk [vmem:[#allocation2 + $0x8] sm:$0xff] %vm172, %v139
    %175 = vst.msk [vmem:[#allocation2 + $0x10] sm:$0xff] %vm172, %v144
    %176 = vst.msk [vmem:[#allocation2 + $0x18] sm:$0xff] %vm172, %v149
    %177 = vst.msk [vmem:[#allocation2 + $0x20] sm:$0xff] %vm172, %v154
    %178 = vst.msk [vmem:[#allocation2 + $0x28] sm:$0xff] %vm172, %v159
    %179 = vst.msk [vmem:[#allocation2 + $0x30] sm:$0xff] %vm172, %v164
    %180 = vst.msk [vmem:[#allocation2 + $0x38] sm:$0xff] %vm172, %v169
    %v181 = vld [vmem:[%s1] sm:$0xff]
    %s182 = scalar_lea.vmem %s1, 8
    %v183 = vld [vmem:[%s182] sm:$0xff]
    %v185 = vsel %vm172, %v183, 0
    %187 = vmatprep.subr.mxu0 0.0
    %188 = vmatpush1.msra.mxu0 %v21
    %189 = vmatprep.subr.mxu0 0.0
    %190 = vmatpush1.msra.mxu0 0.0
    %191 = vmatprep.subr.mxu0 0.0
    %192 = vmatpush1.msra.mxu0 0.0
    %193 = vmatprep.subr.mxu0 0.0
    %194 = vmatpush1.msra.mxu0 0.0
    %195 = vmatprep.subr.mxu0 0.0
    %196 = vmatpush1.msra.mxu0 0.0
    %197 = vmatprep.subr.mxu0 0.0
    %198 = vmatpush1.msra.mxu0 0.0
    %199 = vmatprep.subr.mxu0 0.0
    %200 = vmatpush1.msra.mxu0 0.0
    %201 = vmatprep.subr.mxu0 0.0
    %202 = vmatpush1.msra.mxu0 0.0
    %203 = vmatprep.subr.mxu0 0.0
    %204 = vmatpush1.msra.mxu0 0.0
    %205 = vmatprep.subr.mxu0 0.0
    %206 = vmatpush1.msra.mxu0 0.0
    %207 = vmatprep.subr.mxu0 0.0
    %208 = vmatpush1.msra.mxu0 0.0
    %209 = vmatprep.subr.mxu0 0.0
    %210 = vmatpush1.msra.mxu0 0.0
    %211 = vmatprep.subr.mxu0 0.0
    %212 = vmatpush1.msra.mxu0 0.0
    %213 = vmatprep.subr.mxu0 0.0
    %214 = vmatpush1.msra.mxu0 0.0
    %215 = vmatprep.subr.mxu0 0.0
    %216 = vmatpush1.msra.mxu0 0.0
    %217 = vmatprep.subr.mxu0 0.0
    %218 = vmatpush1.msra.mxu0 0.0
    %219 = vmatprep.subr.mxu0 0.0
    %220 = vmatpush1.msra.mxu0 0.0
    %221 = vmatprep.subr.mxu0 0.0
    %222 = vmatpush1.msra.mxu0 0.0
    %223 = vmatprep.subr.mxu0 0.0
    %224 = vmatpush1.msra.mxu0 0.0
    %225 = vmatprep.subr.mxu0 0.0
    %226 = vmatpush1.msra.mxu0 0.0
    %227 = vmatprep.subr.mxu0 0.0
    %228 = vmatpush1.msra.mxu0 0.0
    %229 = vmatprep.subr.mxu0 0.0
    %230 = vmatpush1.msra.mxu0 0.0
    %231 = vmatprep.subr.mxu0 0.0
    %232 = vmatpush1.msra.mxu0 0.0
    %233 = vmatprep.subr.mxu0 0.0
    %234 = vmatpush1.msra.mxu0 0.0
    %235 = vmatprep.subr.mxu0 0.0
    %236 = vmatpush1.msra.mxu0 0.0
    %237 = vmatprep.subr.mxu0 0.0
    %238 = vmatpush1.msra.mxu0 0.0
    %239 = vmatprep.subr.mxu0 0.0
    %240 = vmatpush1.msra.mxu0 0.0
    %241 = vmatprep.subr.mxu0 0.0
    %242 = vmatpush1.msra.mxu0 0.0
    %243 = vmatprep.subr.mxu0 0.0
    %244 = vmatpush1.msra.mxu0 0.0
    %245 = vmatprep.subr.mxu0 0.0
    %246 = vmatpush1.msra.mxu0 0.0
    %247 = vmatprep.subr.mxu0 0.0
    %248 = vmatpush1.msra.mxu0 0.0
    %249 = vmatprep.subr.mxu0 0.0
    %250 = vmatpush1.msra.mxu0 0.0
    %251 = vmatprep.mubr.f32.mxu0 0.0
    %252 = vmatmul.mubr.f32.gmra.mrb[0].mxu0 %v185
    %v253 = vpop.f32.mrb[0].mxu0
    %v254 = vadd.f32 0.0, %v253
    %v255 = vpop.f32.mrb[0].mxu0
    %256 = vdwg.mxu0
    %v257 = vld [vmem:[#allocation2] sm:$0xff]
    %v259 = vsel %vm172, %v181, 0
    %261 = vmatprep.subr.mxu0 0.0
    %262 = vmatpush1.msra.mxu0 %v19
    %263 = vmatprep.subr.mxu0 0.0
    %264 = vmatpush1.msra.mxu0 0.0
    %265 = vmatprep.subr.mxu0 0.0
    %266 = vmatpush1.msra.mxu0 0.0
    %267 = vmatprep.subr.mxu0 0.0
    %268 = vmatpush1.msra.mxu0 0.0
    %269 = vmatprep.subr.mxu0 0.0
    %270 = vmatpush1.msra.mxu0 0.0
    %271 = vmatprep.subr.mxu0 0.0
    %272 = vmatpush1.msra.mxu0 0.0
    %273 = vmatprep.subr.mxu0 0.0
    %274 = vmatpush1.msra.mxu0 0.0
    %275 = vmatprep.subr.mxu0 0.0
    %276 = vmatpush1.msra.mxu0 0.0
    %277 = vmatprep.subr.mxu0 0.0
    %278 = vmatpush1.msra.mxu0 0.0
    %279 = vmatprep.subr.mxu0 0.0
    %280 = vmatpush1.msra.mxu0 0.0
    %281 = vmatprep.subr.mxu0 0.0
    %282 = vmatpush1.msra.mxu0 0.0
    %283 = vmatprep.subr.mxu0 0.0
    %284 = vmatpush1.msra.mxu0 0.0
    %285 = vmatprep.subr.mxu0 0.0
    %286 = vmatpush1.msra.mxu0 0.0
    %287 = vmatprep.subr.mxu0 0.0
    %288 = vmatpush1.msra.mxu0 0.0
    %289 = vmatprep.subr.mxu0 0.0
    %290 = vmatpush1.msra.mxu0 0.0
    %291 = vmatprep.subr.mxu0 0.0
    %292 = vmatpush1.msra.mxu0 0.0
    %293 = vmatprep.subr.mxu0 0.0
    %294 = vmatpush1.msra.mxu0 0.0
    %295 = vmatprep.subr.mxu0 0.0
    %296 = vmatpush1.msra.mxu0 0.0
    %297 = vmatprep.subr.mxu0 0.0
    %298 = vmatpush1.msra.mxu0 0.0
    %299 = vmatprep.subr.mxu0 0.0
    %300 = vmatpush1.msra.mxu0 0.0
    %301 = vmatprep.subr.mxu0 0.0
    %302 = vmatpush1.msra.mxu0 0.0
    %303 = vmatprep.subr.mxu0 0.0
    %304 = vmatpush1.msra.mxu0 0.0
    %305 = vmatprep.subr.mxu0 0.0
    %306 = vmatpush1.msra.mxu0 0.0
    %307 = vmatprep.subr.mxu0 0.0
    %308 = vmatpush1.msra.mxu0 0.0
    %309 = vmatprep.subr.mxu0 0.0
    %310 = vmatpush1.msra.mxu0 0.0
    %311 = vmatprep.subr.mxu0 0.0
    %312 = vmatpush1.msra.mxu0 0.0
    %313 = vmatprep.subr.mxu0 0.0
    %314 = vmatpush1.msra.mxu0 0.0
    %315 = vmatprep.subr.mxu0 0.0
    %316 = vmatpush1.msra.mxu0 0.0
    %317 = vmatprep.subr.mxu0 0.0
    %318 = vmatpush1.msra.mxu0 0.0
    %319 = vmatprep.subr.mxu0 0.0
    %320 = vmatpush1.msra.mxu0 0.0
    %321 = vmatprep.subr.mxu0 0.0
    %322 = vmatpush1.msra.mxu0 0.0
    %323 = vmatprep.subr.mxu0 0.0
    %324 = vmatpush1.msra.mxu0 0.0
    %325 = vmatprep.mubr.f32.mxu0 0.0
    %326 = vmatmul.mubr.f32.gmra.mrb[0].mxu0 %v259
    %v327 = vpop.f32.mrb[0].mxu0
    %v328 = vadd.f32 0.0, %v327
    %v329 = vpop.f32.mrb[0].mxu0
    %330 = vdwg.mxu0
    %v331 = vadd.f32 %v257, %v328
    %v332 = vtanh.pop %v331
    %v334 = vsel %vm172, %v332, 0
    %336 = vmatprep.subr.mxu0 0.0
    %337 = vmatpush1.msra.mxu0 %v20
    %338 = vmatprep.subr.mxu0 0.0
    %339 = vmatpush1.msra.mxu0 0.0
    %340 = vmatprep.subr.mxu0 0.0
    %341 = vmatpush1.msra.mxu0 0.0
    %342 = vmatprep.subr.mxu0 0.0
    %343 = vmatpush1.msra.mxu0 0.0
    %344 = vmatprep.subr.mxu0 0.0
    %345 = vmatpush1.msra.mxu0 0.0
    %346 = vmatprep.subr.mxu0 0.0
    %347 = vmatpush1.msra.mxu0 0.0
    %348 = vmatprep.subr.mxu0 0.0
    %349 = vmatpush1.msra.mxu0 0.0
    %350 = vmatprep.subr.mxu0 0.0
    %351 = vmatpush1.msra.mxu0 0.0
    %352 = vmatprep.subr.mxu0 0.0
    %353 = vmatpush1.msra.mxu0 0.0
    %354 = vmatprep.subr.mxu0 0.0
    %355 = vmatpush1.msra.mxu0 0.0
    %356 = vmatprep.subr.mxu0 0.0
    %357 = vmatpush1.msra.mxu0 0.0
    %358 = vmatprep.subr.mxu0 0.0
    %359 = vmatpush1.msra.mxu0 0.0
    %360 = vmatprep.subr.mxu0 0.0
    %361 = vmatpush1.msra.mxu0 0.0
    %362 = vmatprep.subr.mxu0 0.0
    %363 = vmatpush1.msra.mxu0 0.0
    %364 = vmatprep.subr.mxu0 0.0
    %365 = vmatpush1.msra.mxu0 0.0
    %366 = vmatprep.subr.mxu0 0.0
    %367 = vmatpush1.msra.mxu0 0.0
    %368 = vmatprep.subr.mxu0 0.0
    %369 = vmatpush1.msra.mxu0 0.0
    %370 = vmatprep.subr.mxu0 0.0
    %371 = vmatpush1.msra.mxu0 0.0
    %372 = vmatprep.subr.mxu0 0.0
    %373 = vmatpush1.msra.mxu0 0.0
    %374 = vmatprep.subr.mxu0 0.0
    %375 = vmatpush1.msra.mxu0 0.0
    %376 = vmatprep.subr.mxu0 0.0
    %377 = vmatpush1.msra.mxu0 0.0
    %378 = vmatprep.subr.mxu0 0.0
    %379 = vmatpush1.msra.mxu0 0.0
    %380 = vmatprep.subr.mxu0 0.0
    %381 = vmatpush1.msra.mxu0 0.0
    %382 = vmatprep.subr.mxu0 0.0
    %383 = vmatpush1.msra.mxu0 0.0
    %384 = vmatprep.subr.mxu0 0.0
    %385 = vmatpush1.msra.mxu0 0.0
    %386 = vmatprep.subr.mxu0 0.0
    %387 = vmatpush1.msra.mxu0 0.0
    %388 = vmatprep.subr.mxu0 0.0
    %389 = vmatpush1.msra.mxu0 0.0
    %390 = vmatprep.subr.mxu0 0.0
    %391 = vmatpush1.msra.mxu0 0.0
    %392 = vmatprep.subr.mxu0 0.0
    %393 = vmatpush1.msra.mxu0 0.0
    %394 = vmatprep.subr.mxu0 0.0
    %395 = vmatpush1.msra.mxu0 0.0
    %396 = vmatprep.subr.mxu0 0.0
    %397 = vmatpush1.msra.mxu0 0.0
    %398 = vmatprep.subr.mxu0 0.0
    %399 = vmatpush1.msra.mxu0 0.0
    %400 = vmatprep.mubr.f32.mxu0 0.0
    %401 = vmatmul.mubr.f32.gmra.mrb[0].mxu0 %v334
    %v402 = vpop.f32.mrb[0].mxu0
    %v403 = vadd.f32 %v254, %v402
    %v404 = vpop.f32.mrb[0].mxu0
    %405 = vdwg.mxu0
    %v406 = vadd.f32 %v403, %v28
    %v407 = vtanh.pop %v406
    %408 = vst.msk [vmem:[#allocation2] sm:$0xff] %vm172, %v407
    %v410 = vsel %vm172, %v407, 0
    %412 = vmatprep.subr.mxu0 0.0
    %413 = vmatpush1.msra.mxu0 %v21
    %414 = vmatprep.subr.mxu0 0.0
    %415 = vmatpush1.msra.mxu0 0.0
    %416 = vmatprep.subr.mxu0 0.0
    %417 = vmatpush1.msra.mxu0 0.0
    %418 = vmatprep.subr.mxu0 0.0
    %419 = vmatpush1.msra.mxu0 0.0
    %420 = vmatprep.subr.mxu0 0.0
    %421 = vmatpush1.msra.mxu0 0.0
    %422 = vmatprep.subr.mxu0 0.0
    %423 = vmatpush1.msra.mxu0 0.0
    %424 = vmatprep.subr.mxu0 0.0
    %425 = vmatpush1.msra.mxu0 0.0
    %426 = vmatprep.subr.mxu0 0.0
    %427 = vmatpush1.msra.mxu0 0.0
    %428 = vmatprep.subr.mxu0 0.0
    %429 = vmatpush1.msra.mxu0 0.0
    %430 = vmatprep.subr.mxu0 0.0
    %431 = vmatpush1.msra.mxu0 0.0
    %432 = vmatprep.subr.mxu0 0.0
    %433 = vmatpush1.msra.mxu0 0.0
    %434 = vmatprep.subr.mxu0 0.0
    %435 = vmatpush1.msra.mxu0 0.0
    %436 = vmatprep.subr.mxu0 0.0
    %437 = vmatpush1.msra.mxu0 0.0
    %438 = vmatprep.subr.mxu0 0.0
    %439 = vmatpush1.msra.mxu0 0.0
    %440 = vmatprep.subr.mxu0 0.0
    %441 = vmatpush1.msra.mxu0 0.0
    %442 = vmatprep.subr.mxu0 0.0
    %443 = vmatpush1.msra.mxu0 0.0
    %444 = vmatprep.subr.mxu0 0.0
    %445 = vmatpush1.msra.mxu0 0.0
    %446 = vmatprep.subr.mxu0 0.0
    %447 = vmatpush1.msra.mxu0 0.0
    %448 = vmatprep.subr.mxu0 0.0
    %449 = vmatpush1.msra.mxu0 0.0
    %450 = vmatprep.subr.mxu0 0.0
    %451 = vmatpush1.msra.mxu0 0.0
    %452 = vmatprep.subr.mxu0 0.0
    %453 = vmatpush1.msra.mxu0 0.0
    %454 = vmatprep.subr.mxu0 0.0
    %455 = vmatpush1.msra.mxu0 0.0
    %456 = vmatprep.subr.mxu0 0.0
    %457 = vmatpush1.msra.mxu0 0.0
    %458 = vmatprep.subr.mxu0 0.0
    %459 = vmatpush1.msra.mxu0 0.0
    %460 = vmatprep.subr.mxu0 0.0
    %461 = vmatpush1.msra.mxu0 0.0
    %462 = vmatprep.subr.mxu0 0.0
    %463 = vmatpush1.msra.mxu0 0.0
    %464 = vmatprep.subr.mxu0 0.0
    %465 = vmatpush1.msra.mxu0 0.0
    %466 = vmatprep.subr.mxu0 0.0
    %467 = vmatpush1.msra.mxu0 0.0
    %468 = vmatprep.subr.mxu0 0.0
    %469 = vmatpush1.msra.mxu0 0.0
    %470 = vmatprep.subr.mxu0 0.0
    %471 = vmatpush1.msra.mxu0 0.0
    %472 = vmatprep.subr.mxu0 0.0
    %473 = vmatpush1.msra.mxu0 0.0
    %474 = vmatprep.subr.mxu0 0.0
    %475 = vmatpush1.msra.mxu0 0.0
    %476 = vmatprep.mubr.f32.mxu0 0.0
    %477 = vmatmul.mubr.f32.gmra.mrb[0].mxu0 %v410
    %v478 = vpop.f32.mrb[0].mxu0
    %v479 = vadd.f32 0.0, %v478
    %v480 = vpop.f32.mrb[0].mxu0
    %481 = vdwg.mxu0
    %s482 = scalar_lea.vmem [#allocation2], 8
    %v483 = vld [vmem:[%s482] sm:$0xff]
    %484 = vmatprep.subr.mxu0 0.0
    %485 = vmatpush1.msra.mxu0 %v19
    %486 = vmatprep.subr.mxu0 0.0
    %487 = vmatpush1.msra.mxu0 0.0
    %488 = vmatprep.subr.mxu0 0.0
    %489 = vmatpush1.msra.mxu0 0.0
    %490 = vmatprep.subr.mxu0 0.0
    %491 = vmatpush1.msra.mxu0 0.0
    %492 = vmatprep.subr.mxu0 0.0
    %493 = vmatpush1.msra.mxu0 0.0
    %494 = vmatprep.subr.mxu0 0.0
    %495 = vmatpush1.msra.mxu0 0.0
    %496 = vmatprep.subr.mxu0 0.0
    %497 = vmatpush1.msra.mxu0 0.0
    %498 = vmatprep.subr.mxu0 0.0
    %499 = vmatpush1.msra.mxu0 0.0
    %500 = vmatprep.subr.mxu0 0.0
    %501 = vmatpush1.msra.mxu0 0.0
    %502 = vmatprep.subr.mxu0 0.0
    %503 = vmatpush1.msra.mxu0 0.0
    %504 = vmatprep.subr.mxu0 0.0
    %505 = vmatpush1.msra.mxu0 0.0
    %506 = vmatprep.subr.mxu0 0.0
    %507 = vmatpush1.msra.mxu0 0.0
    %508 = vmatprep.subr.mxu0 0.0
    %509 = vmatpush1.msra.mxu0 0.0
    %510 = vmatprep.subr.mxu0 0.0
    %511 = vmatpush1.msra.mxu0 0.0
    %512 = vmatprep.subr.mxu0 0.0
    %513 = vmatpush1.msra.mxu0 0.0
    %514 = vmatprep.subr.mxu0 0.0
    %515 = vmatpush1.msra.mxu0 0.0
    %516 = vmatprep.subr.mxu0 0.0
    %517 = vmatpush1.msra.mxu0 0.0
    %518 = vmatprep.subr.mxu0 0.0
    %519 = vmatpush1.msra.mxu0 0.0
    %520 = vmatprep.subr.mxu0 0.0
    %521 = vmatpush1.msra.mxu0 0.0
    %522 = vmatprep.subr.mxu0 0.0
    %523 = vmatpush1.msra.mxu0 0.0
    %524 = vmatprep.subr.mxu0 0.0
    %525 = vmatpush1.msra.mxu0 0.0
    %526 = vmatprep.subr.mxu0 0.0
    %527 = vmatpush1.msra.mxu0 0.0
    %528 = vmatprep.subr.mxu0 0.0
    %529 = vmatpush1.msra.mxu0 0.0
    %530 = vmatprep.subr.mxu0 0.0
    %531 = vmatpush1.msra.mxu0 0.0
    %532 = vmatprep.subr.mxu0 0.0
    %533 = vmatpush1.msra.mxu0 0.0
    %534 = vmatprep.subr.mxu0 0.0
    %535 = vmatpush1.msra.mxu0 0.0
    %536 = vmatprep.subr.mxu0 0.0
    %537 = vmatpush1.msra.mxu0 0.0
    %538 = vmatprep.subr.mxu0 0.0
    %539 = vmatpush1.msra.mxu0 0.0
    %540 = vmatprep.subr.mxu0 0.0
    %541 = vmatpush1.msra.mxu0 0.0
    %542 = vmatprep.subr.mxu0 0.0
    %543 = vmatpush1.msra.mxu0 0.0
    %544 = vmatprep.subr.mxu0 0.0
    %545 = vmatpush1.msra.mxu0 0.0
    %546 = vmatprep.subr.mxu0 0.0
    %547 = vmatpush1.msra.mxu0 0.0
    %548 = vmatprep.mubr.f32.mxu0 0.0
    %549 = vmatmul.mubr.f32.gmra.mrb[0].mxu0 %v334
    %v550 = vpop.f32.mrb[0].mxu0
    %v551 = vadd.f32 0.0, %v550
    %v552 = vpop.f32.mrb[0].mxu0
    %553 = vdwg.mxu0
    %v554 = vadd.f32 %v483, %v551
    %v555 = vtanh.pop %v554
    %v557 = vsel %vm172, %v555, 0
    %559 = vmatprep.subr.mxu0 0.0
    %560 = vmatpush1.msra.mxu0 %v20
    %561 = vmatprep.subr.mxu0 0.0
    %562 = vmatpush1.msra.mxu0 0.0
    %563 = vmatprep.subr.mxu0 0.0
    %564 = vmatpush1.msra.mxu0 0.0
    %565 = vmatprep.subr.mxu0 0.0
    %566 = vmatpush1.msra.mxu0 0.0
    %567 = vmatprep.subr.mxu0 0.0
    %568 = vmatpush1.msra.mxu0 0.0
    %569 = vmatprep.subr.mxu0 0.0
    %570 = vmatpush1.msra.mxu0 0.0
    %571 = vmatprep.subr.mxu0 0.0
    %572 = vmatpush1.msra.mxu0 0.0
    %573 = vmatprep.subr.mxu0 0.0
    %574 = vmatpush1.msra.mxu0 0.0
    %575 = vmatprep.subr.mxu0 0.0
    %576 = vmatpush1.msra.mxu0 0.0
    %577 = vmatprep.subr.mxu0 0.0
    %578 = vmatpush1.msra.mxu0 0.0
    %579 = vmatprep.subr.mxu0 0.0
    %580 = vmatpush1.msra.mxu0 0.0
    %581 = vmatprep.subr.mxu0 0.0
    %582 = vmatpush1.msra.mxu0 0.0
    %583 = vmatprep.subr.mxu0 0.0
    %584 = vmatpush1.msra.mxu0 0.0
    %585 = vmatprep.subr.mxu0 0.0
    %586 = vmatpush1.msra.mxu0 0.0
    %587 = vmatprep.subr.mxu0 0.0
    %588 = vmatpush1.msra.mxu0 0.0
    %589 = vmatprep.subr.mxu0 0.0
    %590 = vmatpush1.msra.mxu0 0.0
    %591 = vmatprep.subr.mxu0 0.0
    %592 = vmatpush1.msra.mxu0 0.0
    %593 = vmatprep.subr.mxu0 0.0
    %594 = vmatpush1.msra.mxu0 0.0
    %595 = vmatprep.subr.mxu0 0.0
    %596 = vmatpush1.msra.mxu0 0.0
    %597 = vmatprep.subr.mxu0 0.0
    %598 = vmatpush1.msra.mxu0 0.0
    %599 = vmatprep.subr.mxu0 0.0
    %600 = vmatpush1.msra.mxu0 0.0
    %601 = vmatprep.subr.mxu0 0.0
    %602 = vmatpush1.msra.mxu0 0.0
    %603 = vmatprep.subr.mxu0 0.0
    %604 = vmatpush1.msra.mxu0 0.0
    %605 = vmatprep.subr.mxu0 0.0
    %606 = vmatpush1.msra.mxu0 0.0
    %607 = vmatprep.subr.mxu0 0.0
    %608 = vmatpush1.msra.mxu0 0.0
    %609 = vmatprep.subr.mxu0 0.0
    %610 = vmatpush1.msra.mxu0 0.0
    %611 = vmatprep.subr.mxu0 0.0
    %612 = vmatpush1.msra.mxu0 0.0
    %613 = vmatprep.subr.mxu0 0.0
    %614 = vmatpush1.msra.mxu0 0.0
    %615 = vmatprep.subr.mxu0 0.0
    %616 = vmatpush1.msra.mxu0 0.0
    %617 = vmatprep.subr.mxu0 0.0
    %618 = vmatpush1.msra.mxu0 0.0
    %619 = vmatprep.subr.mxu0 0.0
    %620 = vmatpush1.msra.mxu0 0.0
    %621 = vmatprep.subr.mxu0 0.0
    %622 = vmatpush1.msra.mxu0 0.0
    %623 = vmatprep.mubr.f32.mxu0 0.0
    %624 = vmatmul.mubr.f32.gmra.mrb[0].mxu0 %v557
    %v625 = vpop.f32.mrb[0].mxu0
    %v626 = vadd.f32 %v479, %v625
    %v627 = vpop.f32.mrb[0].mxu0
    %628 = vdwg.mxu0
    %v629 = vadd.f32 %v626, %v28
    %v630 = vtanh.pop %v629
    %631 = vst.msk [vmem:[%s482] sm:$0xff] %vm172, %v630
    %v633 = vsel %vm172, %v630, 0
    %635 = vmatprep.subr.mxu0 0.0
    %636 = vmatpush1.msra.mxu0 %v21
    %637 = vmatprep.subr.mxu0 0.0
    %638 = vmatpush1.msra.mxu0 0.0
    %639 = vmatprep.subr.mxu0 0.0
    %640 = vmatpush1.msra.mxu0 0.0
    %641 = vmatprep.subr.mxu0 0.0
    %642 = vmatpush1.msra.mxu0 0.0
    %643 = vmatprep.subr.mxu0 0.0
    %644 = vmatpush1.msra.mxu0 0.0
    %645 = vmatprep.subr.mxu0 0.0
    %646 = vmatpush1.msra.mxu0 0.0
    %647 = vmatprep.subr.mxu0 0.0
    %648 = vmatpush1.msra.mxu0 0.0
    %649 = vmatprep.subr.mxu0 0.0
    %650 = vmatpush1.msra.mxu0 0.0
    %651 = vmatprep.subr.mxu0 0.0
    %652 = vmatpush1.msra.mxu0 0.0
    %653 = vmatprep.subr.mxu0 0.0
    %654 = vmatpush1.msra.mxu0 0.0
    %655 = vmatprep.subr.mxu0 0.0
    %656 = vmatpush1.msra.mxu0 0.0
    %657 = vmatprep.subr.mxu0 0.0
    %658 = vmatpush1.msra.mxu0 0.0
    %659 = vmatprep.subr.mxu0 0.0
    %660 = vmatpush1.msra.mxu0 0.0
    %661 = vmatprep.subr.mxu0 0.0
    %662 = vmatpush1.msra.mxu0 0.0
    %663 = vmatprep.subr.mxu0 0.0
    %664 = vmatpush1.msra.mxu0 0.0
    %665 = vmatprep.subr.mxu0 0.0
    %666 = vmatpush1.msra.mxu0 0.0
    %667 = vmatprep.subr.mxu0 0.0
    %668 = vmatpush1.msra.mxu0 0.0
    %669 = vmatprep.subr.mxu0 0.0
    %670 = vmatpush1.msra.mxu0 0.0
    %671 = vmatprep.subr.mxu0 0.0
    %672 = vmatpush1.msra.mxu0 0.0
    %673 = vmatprep.subr.mxu0 0.0
    %674 = vmatpush1.msra.mxu0 0.0
    %675 = vmatprep.subr.mxu0 0.0
    %676 = vmatpush1.msra.mxu0 0.0
    %677 = vmatprep.subr.mxu0 0.0
    %678 = vmatpush1.msra.mxu0 0.0
    %679 = vmatprep.subr.mxu0 0.0
    %680 = vmatpush1.msra.mxu0 0.0
    %681 = vmatprep.subr.mxu0 0.0
    %682 = vmatpush1.msra.mxu0 0.0
    %683 = vmatprep.subr.mxu0 0.0
    %684 = vmatpush1.msra.mxu0 0.0
    %685 = vmatprep.subr.mxu0 0.0
    %686 = vmatpush1.msra.mxu0 0.0
    %687 = vmatprep.subr.mxu0 0.0
    %688 = vmatpush1.msra.mxu0 0.0
    %689 = vmatprep.subr.mxu0 0.0
    %690 = vmatpush1.msra.mxu0 0.0
    %691 = vmatprep.subr.mxu0 0.0
    %692 = vmatpush1.msra.mxu0 0.0
    %693 = vmatprep.subr.mxu0 0.0
    %694 = vmatpush1.msra.mxu0 0.0
    %695 = vmatprep.subr.mxu0 0.0
    %696 = vmatpush1.msra.mxu0 0.0
    %697 = vmatprep.subr.mxu0 0.0
    %698 = vmatpush1.msra.mxu0 0.0
    %699 = vmatprep.mubr.f32.mxu0 0.0
    %700 = vmatmul.mubr.f32.gmra.mrb[0].mxu0 %v633
    %v701 = vpop.f32.mrb[0].mxu0
    %v702 = vadd.f32 0.0, %v701
    %v703 = vpop.f32.mrb[0].mxu0
    %704 = vdwg.mxu0
    %s705 = scalar_lea.vmem [#allocation2], 16
    %v706 = vld [vmem:[%s705] sm:$0xff]
    %707 = vmatprep.subr.mxu0 0.0
    %708 = vmatpush1.msra.mxu0 %v19
    %709 = vmatprep.subr.mxu0 0.0
    %710 = vmatpush1.msra.mxu0 0.0
    %711 = vmatprep.subr.mxu0 0.0
    %712 = vmatpush1.msra.mxu0 0.0
    %713 = vmatprep.subr.mxu0 0.0
    %714 = vmatpush1.msra.mxu0 0.0
    %715 = vmatprep.subr.mxu0 0.0
    %716 = vmatpush1.msra.mxu0 0.0
    %717 = vmatprep.subr.mxu0 0.0
    %718 = vmatpush1.msra.mxu0 0.0
    %719 = vmatprep.subr.mxu0 0.0
    %720 = vmatpush1.msra.mxu0 0.0
    %721 = vmatprep.subr.mxu0 0.0
    %722 = vmatpush1.msra.mxu0 0.0
    %723 = vmatprep.subr.mxu0 0.0
    %724 = vmatpush1.msra.mxu0 0.0
    %725 = vmatprep.subr.mxu0 0.0
    %726 = vmatpush1.msra.mxu0 0.0
    %727 = vmatprep.subr.mxu0 0.0
    %728 = vmatpush1.msra.mxu0 0.0
    %729 = vmatprep.subr.mxu0 0.0
    %730 = vmatpush1.msra.mxu0 0.0
    %731 = vmatprep.subr.mxu0 0.0
    %732 = vmatpush1.msra.mxu0 0.0
    %733 = vmatprep.subr.mxu0 0.0
    %734 = vmatpush1.msra.mxu0 0.0
    %735 = vmatprep.subr.mxu0 0.0
    %736 = vmatpush1.msra.mxu0 0.0
    %737 = vmatprep.subr.mxu0 0.0
    %738 = vmatpush1.msra.mxu0 0.0
    %739 = vmatprep.subr.mxu0 0.0
    %740 = vmatpush1.msra.mxu0 0.0
    %741 = vmatprep.subr.mxu0 0.0
    %742 = vmatpush1.msra.mxu0 0.0
    %743 = vmatprep.subr.mxu0 0.0
    %744 = vmatpush1.msra.mxu0 0.0
    %745 = vmatprep.subr.mxu0 0.0
    %746 = vmatpush1.msra.mxu0 0.0
    %747 = vmatprep.subr.mxu0 0.0
    %748 = vmatpush1.msra.mxu0 0.0
    %749 = vmatprep.subr.mxu0 0.0
    %750 = vmatpush1.msra.mxu0 0.0
    %751 = vmatprep.subr.mxu0 0.0
    %752 = vmatpush1.msra.mxu0 0.0
    %753 = vmatprep.subr.mxu0 0.0
    %754 = vmatpush1.msra.mxu0 0.0
    %755 = vmatprep.subr.mxu0 0.0
    %756 = vmatpush1.msra.mxu0 0.0
    %757 = vmatprep.subr.mxu0 0.0
    %758 = vmatpush1.msra.mxu0 0.0
    %759 = vmatprep.subr.mxu0 0.0
    %760 = vmatpush1.msra.mxu0 0.0
    %761 = vmatprep.subr.mxu0 0.0
    %762 = vmatpush1.msra.mxu0 0.0
    %763 = vmatprep.subr.mxu0 0.0
    %764 = vmatpush1.msra.mxu0 0.0
    %765 = vmatprep.subr.mxu0 0.0
    %766 = vmatpush1.msra.mxu0 0.0
    %767 = vmatprep.subr.mxu0 0.0
    %768 = vmatpush1.msra.mxu0 0.0
    %769 = vmatprep.subr.mxu0 0.0
    %770 = vmatpush1.msra.mxu0 0.0
    %771 = vmatprep.mubr.f32.mxu0 0.0
    %772 = vmatmul.mubr.f32.gmra.mrb[0].mxu0 %v557
    %v773 = vpop.f32.mrb[0].mxu0
    %v774 = vadd.f32 0.0, %v773
    %v775 = vpop.f32.mrb[0].mxu0
    %776 = vdwg.mxu0
    %v777 = vadd.f32 %v706, %v774
    %v778 = vtanh.pop %v777
    %v780 = vsel %vm172, %v778, 0
    %782 = vmatprep.subr.mxu0 0.0
    %783 = vmatpush1.msra.mxu0 %v20
    %784 = vmatprep.subr.mxu0 0.0
    %785 = vmatpush1.msra.mxu0 0.0
    %786 = vmatprep.subr.mxu0 0.0
    %787 = vmatpush1.msra.mxu0 0.0
    %788 = vmatprep.subr.mxu0 0.0
    %789 = vmatpush1.msra.mxu0 0.0
    %790 = vmatprep.subr.mxu0 0.0
    %791 = vmatpush1.msra.mxu0 0.0
    %792 = vmatprep.subr.mxu0 0.0
    %793 = vmatpush1.msra.mxu0 0.0
    %794 = vmatprep.subr.mxu0 0.0
    %795 = vmatpush1.msra.mxu0 0.0
    %796 = vmatprep.subr.mxu0 0.0
    %797 = vmatpush1.msra.mxu0 0.0
    %798 = vmatprep.subr.mxu0 0.0
    %799 = vmatpush1.msra.mxu0 0.0
    %800 = vmatprep.subr.mxu0 0.0
    %801 = vmatpush1.msra.mxu0 0.0
    %802 = vmatprep.subr.mxu0 0.0
    %803 = vmatpush1.msra.mxu0 0.0
    %804 = vmatprep.subr.mxu0 0.0
    %805 = vmatpush1.msra.mxu0 0.0
    %806 = vmatprep.subr.mxu0 0.0
    %807 = vmatpush1.msra.mxu0 0.0
    %808 = vmatprep.subr.mxu0 0.0
    %809 = vmatpush1.msra.mxu0 0.0
    %810 = vmatprep.subr.mxu0 0.0
    %811 = vmatpush1.msra.mxu0 0.0
    %812 = vmatprep.subr.mxu0 0.0
    %813 = vmatpush1.msra.mxu0 0.0
    %814 = vmatprep.subr.mxu0 0.0
    %815 = vmatpush1.msra.mxu0 0.0
    %816 = vmatprep.subr.mxu0 0.0
    %817 = vmatpush1.msra.mxu0 0.0
    %818 = vmatprep.subr.mxu0 0.0
    %819 = vmatpush1.msra.mxu0 0.0
    %820 = vmatprep.subr.mxu0 0.0
    %821 = vmatpush1.msra.mxu0 0.0
    %822 = vmatprep.subr.mxu0 0.0
    %823 = vmatpush1.msra.mxu0 0.0
    %824 = vmatprep.subr.mxu0 0.0
    %825 = vmatpush1.msra.mxu0 0.0
    %826 = vmatprep.subr.mxu0 0.0
    %827 = vmatpush1.msra.mxu0 0.0
    %828 = vmatprep.subr.mxu0 0.0
    %829 = vmatpush1.msra.mxu0 0.0
    %830 = vmatprep.subr.mxu0 0.0
    %831 = vmatpush1.msra.mxu0 0.0
    %832 = vmatprep.subr.mxu0 0.0
    %833 = vmatpush1.msra.mxu0 0.0
    %834 = vmatprep.subr.mxu0 0.0
    %835 = vmatpush1.msra.mxu0 0.0
    %836 = vmatprep.subr.mxu0 0.0
    %837 = vmatpush1.msra.mxu0 0.0
    %838 = vmatprep.subr.mxu0 0.0
    %839 = vmatpush1.msra.mxu0 0.0
    %840 = vmatprep.subr.mxu0 0.0
    %841 = vmatpush1.msra.mxu0 0.0
    %842 = vmatprep.subr.mxu0 0.0
    %843 = vmatpush1.msra.mxu0 0.0
    %844 = vmatprep.subr.mxu0 0.0
    %845 = vmatpush1.msra.mxu0 0.0
    %846 = vmatprep.mubr.f32.mxu0 0.0
    %847 = vmatmul.mubr.f32.gmra.mrb[0].mxu0 %v780
    %v848 = vpop.f32.mrb[0].mxu0
    %v849 = vadd.f32 %v702, %v848
    %v850 = vpop.f32.mrb[0].mxu0
    %851 = vdwg.mxu0
    %v852 = vadd.f32 %v849, %v28
    %v853 = vtanh.pop %v852
    %854 = vst.msk [vmem:[%s705] sm:$0xff] %vm172, %v853
    %v856 = vsel %vm172, %v853, 0
    %858 = vmatprep.subr.mxu0 0.0
    %859 = vmatpush1.msra.mxu0 %v21
    %860 = vmatprep.subr.mxu0 0.0
    %861 = vmatpush1.msra.mxu0 0.0
    %862 = vmatprep.subr.mxu0 0.0
    %863 = vmatpush1.msra.mxu0 0.0
    %864 = vmatprep.subr.mxu0 0.0
    %865 = vmatpush1.msra.mxu0 0.0
    %866 = vmatprep.subr.mxu0 0.0
    %867 = vmatpush1.msra.mxu0 0.0
    %868 = vmatprep.subr.mxu0 0.0
    %869 = vmatpush1.msra.mxu0 0.0
    %870 = vmatprep.subr.mxu0 0.0
    %871 = vmatpush1.msra.mxu0 0.0
    %872 = vmatprep.subr.mxu0 0.0
    %873 = vmatpush1.msra.mxu0 0.0
    %874 = vmatprep.subr.mxu0 0.0
    %875 = vmatpush1.msra.mxu0 0.0
    %876 = vmatprep.subr.mxu0 0.0
    %877 = vmatpush1.msra.mxu0 0.0
    %878 = vmatprep.subr.mxu0 0.0
    %879 = vmatpush1.msra.mxu0 0.0
    %880 = vmatprep.subr.mxu0 0.0
    %881 = vmatpush1.msra.mxu0 0.0
    %882 = vmatprep.subr.mxu0 0.0
    %883 = vmatpush1.msra.mxu0 0.0
    %884 = vmatprep.subr.mxu0 0.0
    %885 = vmatpush1.msra.mxu0 0.0
    %886 = vmatprep.subr.mxu0 0.0
    %887 = vmatpush1.msra.mxu0 0.0
    %888 = vmatprep.subr.mxu0 0.0
    %889 = vmatpush1.msra.mxu0 0.0
    %890 = vmatprep.subr.mxu0 0.0
    %891 = vmatpush1.msra.mxu0 0.0
    %892 = vmatprep.subr.mxu0 0.0
    %893 = vmatpush1.msra.mxu0 0.0
    %894 = vmatprep.subr.mxu0 0.0
    %895 = vmatpush1.msra.mxu0 0.0
    %896 = vmatprep.subr.mxu0 0.0
    %897 = vmatpush1.msra.mxu0 0.0
    %898 = vmatprep.subr.mxu0 0.0
    %899 = vmatpush1.msra.mxu0 0.0
    %900 = vmatprep.subr.mxu0 0.0
    %901 = vmatpush1.msra.mxu0 0.0
    %902 = vmatprep.subr.mxu0 0.0
    %903 = vmatpush1.msra.mxu0 0.0
    %904 = vmatprep.subr.mxu0 0.0
    %905 = vmatpush1.msra.mxu0 0.0
    %906 = vmatprep.subr.mxu0 0.0
    %907 = vmatpush1.msra.mxu0 0.0
    %908 = vmatprep.subr.mxu0 0.0
    %909 = vmatpush1.msra.mxu0 0.0
    %910 = vmatprep.subr.mxu0 0.0
    %911 = vmatpush1.msra.mxu0 0.0
    %912 = vmatprep.subr.mxu0 0.0
    %913 = vmatpush1.msra.mxu0 0.0
    %914 = vmatprep.subr.mxu0 0.0
    %915 = vmatpush1.msra.mxu0 0.0
    %916 = vmatprep.subr.mxu0 0.0
    %917 = vmatpush1.msra.mxu0 0.0
    %918 = vmatprep.subr.mxu0 0.0
    %919 = vmatpush1.msra.mxu0 0.0
    %920 = vmatprep.subr.mxu0 0.0
    %921 = vmatpush1.msra.mxu0 0.0
    %922 = vmatprep.mubr.f32.mxu0 0.0
    %923 = vmatmul.mubr.f32.gmra.mrb[0].mxu0 %v856
    %v924 = vpop.f32.mrb[0].mxu0
    %v925 = vadd.f32 0.0, %v924
    %v926 = vpop.f32.mrb[0].mxu0
    %927 = vdwg.mxu0
    %s928 = scalar_lea.vmem [#allocation2], 24
    %v929 = vld [vmem:[%s928] sm:$0xff]
    %930 = vmatprep.subr.mxu0 0.0
    %931 = vmatpush1.msra.mxu0 %v19
    %932 = vmatprep.subr.mxu0 0.0
    %933 = vmatpush1.msra.mxu0 0.0
    %934 = vmatprep.subr.mxu0 0.0
    %935 = vmatpush1.msra.mxu0 0.0
    %936 = vmatprep.subr.mxu0 0.0
    %937 = vmatpush1.msra.mxu0 0.0
    %938 = vmatprep.subr.mxu0 0.0
    %939 = vmatpush1.msra.mxu0 0.0
    %940 = vmatprep.subr.mxu0 0.0
    %941 = vmatpush1.msra.mxu0 0.0
    %942 = vmatprep.subr.mxu0 0.0
    %943 = vmatpush1.msra.mxu0 0.0
    %944 = vmatprep.subr.mxu0 0.0
    %945 = vmatpush1.msra.mxu0 0.0
    %946 = vmatprep.subr.mxu0 0.0
    %947 = vmatpush1.msra.mxu0 0.0
    %948 = vmatprep.subr.mxu0 0.0
    %949 = vmatpush1.msra.mxu0 0.0
    %950 = vmatprep.subr.mxu0 0.0
    %951 = vmatpush1.msra.mxu0 0.0
    %952 = vmatprep.subr.mxu0 0.0
    %953 = vmatpush1.msra.mxu0 0.0
    %954 = vmatprep.subr.mxu0 0.0
    %955 = vmatpush1.msra.mxu0 0.0
    %956 = vmatprep.subr.mxu0 0.0
    %957 = vmatpush1.msra.mxu0 0.0
    %958 = vmatprep.subr.mxu0 0.0
    %959 = vmatpush1.msra.mxu0 0.0
    %960 = vmatprep.subr.mxu0 0.0
    %961 = vmatpush1.msra.mxu0 0.0
    %962 = vmatprep.subr.mxu0 0.0
    %963 = vmatpush1.msra.mxu0 0.0
    %964 = vmatprep.subr.mxu0 0.0
    %965 = vmatpush1.msra.mxu0 0.0
    %966 = vmatprep.subr.mxu0 0.0
    %967 = vmatpush1.msra.mxu0 0.0
    %968 = vmatprep.subr.mxu0 0.0
    %969 = vmatpush1.msra.mxu0 0.0
    %970 = vmatprep.subr.mxu0 0.0
    %971 = vmatpush1.msra.mxu0 0.0
    %972 = vmatprep.subr.mxu0 0.0
    %973 = vmatpush1.msra.mxu0 0.0
    %974 = vmatprep.subr.mxu0 0.0
    %975 = vmatpush1.msra.mxu0 0.0
    %976 = vmatprep.subr.mxu0 0.0
    %977 = vmatpush1.msra.mxu0 0.0
    %978 = vmatprep.subr.mxu0 0.0
    %979 = vmatpush1.msra.mxu0 0.0
    %980 = vmatprep.subr.mxu0 0.0
    %981 = vmatpush1.msra.mxu0 0.0
    %982 = vmatprep.subr.mxu0 0.0
    %983 = vmatpush1.msra.mxu0 0.0
    %984 = vmatprep.subr.mxu0 0.0
    %985 = vmatpush1.msra.mxu0 0.0
    %986 = vmatprep.subr.mxu0 0.0
    %987 = vmatpush1.msra.mxu0 0.0
    %988 = vmatprep.subr.mxu0 0.0
    %989 = vmatpush1.msra.mxu0 0.0
    %990 = vmatprep.subr.mxu0 0.0
    %991 = vmatpush1.msra.mxu0 0.0
    %992 = vmatprep.subr.mxu0 0.0
    %993 = vmatpush1.msra.mxu0 0.0
    %994 = vmatprep.mubr.f32.mxu0 0.0
    %995 = vmatmul.mubr.f32.gmra.mrb[0].mxu0 %v780
    %v996 = vpop.f32.mrb[0].mxu0
    %v997 = vadd.f32 0.0, %v996
    %v998 = vpop.f32.mrb[0].mxu0
    %999 = vdwg.mxu0
    %v1000 = vadd.f32 %v929, %v997
    %v1001 = vtanh.pop %v1000
    %v1003 = vsel %vm172, %v1001, 0
    %1005 = vmatprep.subr.mxu0 0.0
    %1006 = vmatpush1.msra.mxu0 %v20
    %1007 = vmatprep.subr.mxu0 0.0
    %1008 = vmatpush1.msra.mxu0 0.0
    %1009 = vmatprep.subr.mxu0 0.0
    %1010 = vmatpush1.msra.mxu0 0.0
    %1011 = vmatprep.subr.mxu0 0.0
    %1012 = vmatpush1.msra.mxu0 0.0
    %1013 = vmatprep.subr.mxu0 0.0
    %1014 = vmatpush1.msra.mxu0 0.0
    %1015 = vmatprep.subr.mxu0 0.0
    %1016 = vmatpush1.msra.mxu0 0.0
    %1017 = vmatprep.subr.mxu0 0.0
    %1018 = vmatpush1.msra.mxu0 0.0
    %1019 = vmatprep.subr.mxu0 0.0
    %1020 = vmatpush1.msra.mxu0 0.0
    %1021 = vmatprep.subr.mxu0 0.0
    %1022 = vmatpush1.msra.mxu0 0.0
    %1023 = vmatprep.subr.mxu0 0.0
    %1024 = vmatpush1.msra.mxu0 0.0
    %1025 = vmatprep.subr.mxu0 0.0
    %1026 = vmatpush1.msra.mxu0 0.0
    %1027 = vmatprep.subr.mxu0 0.0
    %1028 = vmatpush1.msra.mxu0 0.0
    %1029 = vmatprep.subr.mxu0 0.0
    %1030 = vmatpush1.msra.mxu0 0.0
    %1031 = vmatprep.subr.mxu0 0.0
    %1032 = vmatpush1.msra.mxu0 0.0
    %1033 = vmatprep.subr.mxu0 0.0
    %1034 = vmatpush1.msra.mxu0 0.0
    %1035 = vmatprep.subr.mxu0 0.0
    %1036 = vmatpush1.msra.mxu0 0.0
    %1037 = vmatprep.subr.mxu0 0.0
    %1038 = vmatpush1.msra.mxu0 0.0
    %1039 = vmatprep.subr.mxu0 0.0
    %1040 = vmatpush1.msra.mxu0 0.0
    %1041 = vmatprep.subr.mxu0 0.0
    %1042 = vmatpush1.msra.mxu0 0.0
    %1043 = vmatprep.subr.mxu0 0.0
    %1044 = vmatpush1.msra.mxu0 0.0
    %1045 = vmatprep.subr.mxu0 0.0
    %1046 = vmatpush1.msra.mxu0 0.0
    %1047 = vmatprep.subr.mxu0 0.0
    %1048 = vmatpush1.msra.mxu0 0.0
    %1049 = vmatprep.subr.mxu0 0.0
    %1050 = vmatpush1.msra.mxu0 0.0
    %1051 = vmatprep.subr.mxu0 0.0
    %1052 = vmatpush1.msra.mxu0 0.0
    %1053 = vmatprep.subr.mxu0 0.0
    %1054 = vmatpush1.msra.mxu0 0.0
    %1055 = vmatprep.subr.mxu0 0.0
    %1056 = vmatpush1.msra.mxu0 0.0
    %1057 = vmatprep.subr.mxu0 0.0
    %1058 = vmatpush1.msra.mxu0 0.0
    %1059 = vmatprep.subr.mxu0 0.0
    %1060 = vmatpush1.msra.mxu0 0.0
    %1061 = vmatprep.subr.mxu0 0.0
    %1062 = vmatpush1.msra.mxu0 0.0
    %1063 = vmatprep.subr.mxu0 0.0
    %1064 = vmatpush1.msra.mxu0 0.0
    %1065 = vmatprep.subr.mxu0 0.0
    %1066 = vmatpush1.msra.mxu0 0.0
    %1067 = vmatprep.subr.mxu0 0.0
    %1068 = vmatpush1.msra.mxu0 0.0
    %1069 = vmatprep.mubr.f32.mxu0 0.0
    %1070 = vmatmul.mubr.f32.gmra.mrb[0].mxu0 %v1003
    %v1071 = vpop.f32.mrb[0].mxu0
    %v1072 = vadd.f32 %v925, %v1071
    %v1073 = vpop.f32.mrb[0].mxu0
    %1074 = vdwg.mxu0
    %v1075 = vadd.f32 %v1072, %v28
    %v1076 = vtanh.pop %v1075
    %1077 = vst.msk [vmem:[%s928] sm:$0xff] %vm172, %v1076
    %v1079 = vsel %vm172, %v1076, 0
    %1081 = vmatprep.subr.mxu0 0.0
    %1082 = vmatpush1.msra.mxu0 %v21
    %1083 = vmatprep.subr.mxu0 0.0
    %1084 = vmatpush1.msra.mxu0 0.0
    %1085 = vmatprep.subr.mxu0 0.0
    %1086 = vmatpush1.msra.mxu0 0.0
    %1087 = vmatprep.subr.mxu0 0.0
    %1088 = vmatpush1.msra.mxu0 0.0
    %1089 = vmatprep.subr.mxu0 0.0
    %1090 = vmatpush1.msra.mxu0 0.0
    %1091 = vmatprep.subr.mxu0 0.0
    %1092 = vmatpush1.msra.mxu0 0.0
    %1093 = vmatprep.subr.mxu0 0.0
    %1094 = vmatpush1.msra.mxu0 0.0
    %1095 = vmatprep.subr.mxu0 0.0
    %1096 = vmatpush1.msra.mxu0 0.0
    %1097 = vmatprep.subr.mxu0 0.0
    %1098 = vmatpush1.msra.mxu0 0.0
    %1099 = vmatprep.subr.mxu0 0.0
    %1100 = vmatpush1.msra.mxu0 0.0
    %1101 = vmatprep.subr.mxu0 0.0
    %1102 = vmatpush1.msra.mxu0 0.0
    %1103 = vmatprep.subr.mxu0 0.0
    %1104 = vmatpush1.msra.mxu0 0.0
    %1105 = vmatprep.subr.mxu0 0.0
    %1106 = vmatpush1.msra.mxu0 0.0
    %1107 = vmatprep.subr.mxu0 0.0
    %1108 = vmatpush1.msra.mxu0 0.0
    %1109 = vmatprep.subr.mxu0 0.0
    %1110 = vmatpush1.msra.mxu0 0.0
    %1111 = vmatprep.subr.mxu0 0.0
    %1112 = vmatpush1.msra.mxu0 0.0
    %1113 = vmatprep.subr.mxu0 0.0
    %1114 = vmatpush1.msra.mxu0 0.0
    %1115 = vmatprep.subr.mxu0 0.0
    %1116 = vmatpush1.msra.mxu0 0.0
    %1117 = vmatprep.subr.mxu0 0.0
    %1118 = vmatpush1.msra.mxu0 0.0
    %1119 = vmatprep.subr.mxu0 0.0
    %1120 = vmatpush1.msra.mxu0 0.0
    %1121 = vmatprep.subr.mxu0 0.0
    %1122 = vmatpush1.msra.mxu0 0.0
    %1123 = vmatprep.subr.mxu0 0.0
    %1124 = vmatpush1.msra.mxu0 0.0
    %1125 = vmatprep.subr.mxu0 0.0
    %1126 = vmatpush1.msra.mxu0 0.0
    %1127 = vmatprep.subr.mxu0 0.0
    %1128 = vmatpush1.msra.mxu0 0.0
    %1129 = vmatprep.subr.mxu0 0.0
    %1130 = vmatpush1.msra.mxu0 0.0
    %1131 = vmatprep.subr.mxu0 0.0
    %1132 = vmatpush1.msra.mxu0 0.0
    %1133 = vmatprep.subr.mxu0 0.0
    %1134 = vmatpush1.msra.mxu0 0.0
    %1135 = vmatprep.subr.mxu0 0.0
    %1136 = vmatpush1.msra.mxu0 0.0
    %1137 = vmatprep.subr.mxu0 0.0
    %1138 = vmatpush1.msra.mxu0 0.0
    %1139 = vmatprep.subr.mxu0 0.0
    %1140 = vmatpush1.msra.mxu0 0.0
    %1141 = vmatprep.subr.mxu0 0.0
    %1142 = vmatpush1.msra.mxu0 0.0
    %1143 = vmatprep.subr.mxu0 0.0
    %1144 = vmatpush1.msra.mxu0 0.0
    %1145 = vmatprep.mubr.f32.mxu0 0.0
    %1146 = vmatmul.mubr.f32.gmra.mrb[0].mxu0 %v1079
    %v1147 = vpop.f32.mrb[0].mxu0
    %v1148 = vadd.f32 0.0, %v1147
    %v1149 = vpop.f32.mrb[0].mxu0
    %1150 = vdwg.mxu0
    %s1151 = scalar_lea.vmem [#allocation2], 32
    %v1152 = vld [vmem:[%s1151] sm:$0xff]
    %1153 = vmatprep.subr.mxu0 0.0
    %1154 = vmatpush1.msra.mxu0 %v19
    %1155 = vmatprep.subr.mxu0 0.0
    %1156 = vmatpush1.msra.mxu0 0.0
    %1157 = vmatprep.subr.mxu0 0.0
    %1158 = vmatpush1.msra.mxu0 0.0
    %1159 = vmatprep.subr.mxu0 0.0
    %1160 = vmatpush1.msra.mxu0 0.0
    %1161 = vmatprep.subr.mxu0 0.0
    %1162 = vmatpush1.msra.mxu0 0.0
    %1163 = vmatprep.subr.mxu0 0.0
    %1164 = vmatpush1.msra.mxu0 0.0
    %1165 = vmatprep.subr.mxu0 0.0
    %1166 = vmatpush1.msra.mxu0 0.0
    %1167 = vmatprep.subr.mxu0 0.0
    %1168 = vmatpush1.msra.mxu0 0.0
    %1169 = vmatprep.subr.mxu0 0.0
    %1170 = vmatpush1.msra.mxu0 0.0
    %1171 = vmatprep.subr.mxu0 0.0
    %1172 = vmatpush1.msra.mxu0 0.0
    %1173 = vmatprep.subr.mxu0 0.0
    %1174 = vmatpush1.msra.mxu0 0.0
    %1175 = vmatprep.subr.mxu0 0.0
    %1176 = vmatpush1.msra.mxu0 0.0
    %1177 = vmatprep.subr.mxu0 0.0
    %1178 = vmatpush1.msra.mxu0 0.0
    %1179 = vmatprep.subr.mxu0 0.0
    %1180 = vmatpush1.msra.mxu0 0.0
    %1181 = vmatprep.subr.mxu0 0.0
    %1182 = vmatpush1.msra.mxu0 0.0
    %1183 = vmatprep.subr.mxu0 0.0
    %1184 = vmatpush1.msra.mxu0 0.0
    %1185 = vmatprep.subr.mxu0 0.0
    %1186 = vmatpush1.msra.mxu0 0.0
    %1187 = vmatprep.subr.mxu0 0.0
    %1188 = vmatpush1.msra.mxu0 0.0
    %1189 = vmatprep.subr.mxu0 0.0
    %1190 = vmatpush1.msra.mxu0 0.0
    %1191 = vmatprep.subr.mxu0 0.0
    %1192 = vmatpush1.msra.mxu0 0.0
    %1193 = vmatprep.subr.mxu0 0.0
    %1194 = vmatpush1.msra.mxu0 0.0
    %1195 = vmatprep.subr.mxu0 0.0
    %1196 = vmatpush1.msra.mxu0 0.0
    %1197 = vmatprep.subr.mxu0 0.0
    %1198 = vmatpush1.msra.mxu0 0.0
    %1199 = vmatprep.subr.mxu0 0.0
    %1200 = vmatpush1.msra.mxu0 0.0
    %1201 = vmatprep.subr.mxu0 0.0
    %1202 = vmatpush1.msra.mxu0 0.0
    %1203 = vmatprep.subr.mxu0 0.0
    %1204 = vmatpush1.msra.mxu0 0.0
    %1205 = vmatprep.subr.mxu0 0.0
    %1206 = vmatpush1.msra.mxu0 0.0
    %1207 = vmatprep.subr.mxu0 0.0
    %1208 = vmatpush1.msra.mxu0 0.0
    %1209 = vmatprep.subr.mxu0 0.0
    %1210 = vmatpush1.msra.mxu0 0.0
    %1211 = vmatprep.subr.mxu0 0.0
    %1212 = vmatpush1.msra.mxu0 0.0
    %1213 = vmatprep.subr.mxu0 0.0
    %1214 = vmatpush1.msra.mxu0 0.0
    %1215 = vmatprep.subr.mxu0 0.0
    %1216 = vmatpush1.msra.mxu0 0.0
    %1217 = vmatprep.mubr.f32.mxu0 0.0
    %1218 = vmatmul.mubr.f32.gmra.mrb[0].mxu0 %v1003
    %v1219 = vpop.f32.mrb[0].mxu0
    %v1220 = vadd.f32 0.0, %v1219
    %v1221 = vpop.f32.mrb[0].mxu0
    %1222 = vdwg.mxu0
    %v1223 = vadd.f32 %v1152, %v1220
    %v1224 = vtanh.pop %v1223
    %v1226 = vsel %vm172, %v1224, 0
    %1228 = vmatprep.subr.mxu0 0.0
    %1229 = vmatpush1.msra.mxu0 %v20
    %1230 = vmatprep.subr.mxu0 0.0
    %1231 = vmatpush1.msra.mxu0 0.0
    %1232 = vmatprep.subr.mxu0 0.0
    %1233 = vmatpush1.msra.mxu0 0.0
    %1234 = vmatprep.subr.mxu0 0.0
    %1235 = vmatpush1.msra.mxu0 0.0
    %1236 = vmatprep.subr.mxu0 0.0
    %1237 = vmatpush1.msra.mxu0 0.0
    %1238 = vmatprep.subr.mxu0 0.0
    %1239 = vmatpush1.msra.mxu0 0.0
    %1240 = vmatprep.subr.mxu0 0.0
    %1241 = vmatpush1.msra.mxu0 0.0
    %1242 = vmatprep.subr.mxu0 0.0
    %1243 = vmatpush1.msra.mxu0 0.0
    %1244 = vmatprep.subr.mxu0 0.0
    %1245 = vmatpush1.msra.mxu0 0.0
    %1246 = vmatprep.subr.mxu0 0.0
    %1247 = vmatpush1.msra.mxu0 0.0
    %1248 = vmatprep.subr.mxu0 0.0
    %1249 = vmatpush1.msra.mxu0 0.0
    %1250 = vmatprep.subr.mxu0 0.0
    %1251 = vmatpush1.msra.mxu0 0.0
    %1252 = vmatprep.subr.mxu0 0.0
    %1253 = vmatpush1.msra.mxu0 0.0
    %1254 = vmatprep.subr.mxu0 0.0
    %1255 = vmatpush1.msra.mxu0 0.0
    %1256 = vmatprep.subr.mxu0 0.0
    %1257 = vmatpush1.msra.mxu0 0.0
    %1258 = vmatprep.subr.mxu0 0.0
    %1259 = vmatpush1.msra.mxu0 0.0
    %1260 = vmatprep.subr.mxu0 0.0
    %1261 = vmatpush1.msra.mxu0 0.0
    %1262 = vmatprep.subr.mxu0 0.0
    %1263 = vmatpush1.msra.mxu0 0.0
    %1264 = vmatprep.subr.mxu0 0.0
    %1265 = vmatpush1.msra.mxu0 0.0
    %1266 = vmatprep.subr.mxu0 0.0
    %1267 = vmatpush1.msra.mxu0 0.0
    %1268 = vmatprep.subr.mxu0 0.0
    %1269 = vmatpush1.msra.mxu0 0.0
    %1270 = vmatprep.subr.mxu0 0.0
    %1271 = vmatpush1.msra.mxu0 0.0
    %1272 = vmatprep.subr.mxu0 0.0
    %1273 = vmatpush1.msra.mxu0 0.0
    %1274 = vmatprep.subr.mxu0 0.0
    %1275 = vmatpush1.msra.mxu0 0.0
    %1276 = vmatprep.subr.mxu0 0.0
    %1277 = vmatpush1.msra.mxu0 0.0
    %1278 = vmatprep.subr.mxu0 0.0
    %1279 = vmatpush1.msra.mxu0 0.0
    %1280 = vmatprep.subr.mxu0 0.0
    %1281 = vmatpush1.msra.mxu0 0.0
    %1282 = vmatprep.subr.mxu0 0.0
    %1283 = vmatpush1.msra.mxu0 0.0
    %1284 = vmatprep.subr.mxu0 0.0
    %1285 = vmatpush1.msra.mxu0 0.0
    %1286 = vmatprep.subr.mxu0 0.0
    %1287 = vmatpush1.msra.mxu0 0.0
    %1288 = vmatprep.subr.mxu0 0.0
    %1289 = vmatpush1.msra.mxu0 0.0
    %1290 = vmatprep.subr.mxu0 0.0
    %1291 = vmatpush1.msra.mxu0 0.0
    %1292 = vmatprep.mubr.f32.mxu0 0.0
    %1293 = vmatmul.mubr.f32.gmra.mrb[0].mxu0 %v1226
    %v1294 = vpop.f32.mrb[0].mxu0
    %v1295 = vadd.f32 %v1148, %v1294
    %v1296 = vpop.f32.mrb[0].mxu0
    %1297 = vdwg.mxu0
    %v1298 = vadd.f32 %v1295, %v28
    %v1299 = vtanh.pop %v1298
    %1300 = vst.msk [vmem:[%s1151] sm:$0xff] %vm172, %v1299
    %v1302 = vsel %vm172, %v1299, 0
    %1304 = vmatprep.subr.mxu0 0.0
    %1305 = vmatpush1.msra.mxu0 %v21
    %1306 = vmatprep.subr.mxu0 0.0
    %1307 = vmatpush1.msra.mxu0 0.0
    %1308 = vmatprep.subr.mxu0 0.0
    %1309 = vmatpush1.msra.mxu0 0.0
    %1310 = vmatprep.subr.mxu0 0.0
    %1311 = vmatpush1.msra.mxu0 0.0
    %1312 = vmatprep.subr.mxu0 0.0
    %1313 = vmatpush1.msra.mxu0 0.0
    %1314 = vmatprep.subr.mxu0 0.0
    %1315 = vmatpush1.msra.mxu0 0.0
    %1316 = vmatprep.subr.mxu0 0.0
    %1317 = vmatpush1.msra.mxu0 0.0
    %1318 = vmatprep.subr.mxu0 0.0
    %1319 = vmatpush1.msra.mxu0 0.0
    %1320 = vmatprep.subr.mxu0 0.0
    %1321 = vmatpush1.msra.mxu0 0.0
    %1322 = vmatprep.subr.mxu0 0.0
    %1323 = vmatpush1.msra.mxu0 0.0
    %1324 = vmatprep.subr.mxu0 0.0
    %1325 = vmatpush1.msra.mxu0 0.0
    %1326 = vmatprep.subr.mxu0 0.0
    %1327 = vmatpush1.msra.mxu0 0.0
    %1328 = vmatprep.subr.mxu0 0.0
    %1329 = vmatpush1.msra.mxu0 0.0
    %1330 = vmatprep.subr.mxu0 0.0
    %1331 = vmatpush1.msra.mxu0 0.0
    %1332 = vmatprep.subr.mxu0 0.0
    %1333 = vmatpush1.msra.mxu0 0.0
    %1334 = vmatprep.subr.mxu0 0.0
    %1335 = vmatpush1.msra.mxu0 0.0
    %1336 = vmatprep.subr.mxu0 0.0
    %1337 = vmatpush1.msra.mxu0 0.0
    %1338 = vmatprep.subr.mxu0 0.0
    %1339 = vmatpush1.msra.mxu0 0.0
    %1340 = vmatprep.subr.mxu0 0.0
    %1341 = vmatpush1.msra.mxu0 0.0
    %1342 = vmatprep.subr.mxu0 0.0
    %1343 = vmatpush1.msra.mxu0 0.0
    %1344 = vmatprep.subr.mxu0 0.0
    %1345 = vmatpush1.msra.mxu0 0.0
    %1346 = vmatprep.subr.mxu0 0.0
    %1347 = vmatpush1.msra.mxu0 0.0
    %1348 = vmatprep.subr.mxu0 0.0
    %1349 = vmatpush1.msra.mxu0 0.0
    %1350 = vmatprep.subr.mxu0 0.0
    %1351 = vmatpush1.msra.mxu0 0.0
    %1352 = vmatprep.subr.mxu0 0.0
    %1353 = vmatpush1.msra.mxu0 0.0
    %1354 = vmatprep.subr.mxu0 0.0
    %1355 = vmatpush1.msra.mxu0 0.0
    %1356 = vmatprep.subr.mxu0 0.0
    %1357 = vmatpush1.msra.mxu0 0.0
    %1358 = vmatprep.subr.mxu0 0.0
    %1359 = vmatpush1.msra.mxu0 0.0
    %1360 = vmatprep.subr.mxu0 0.0
    %1361 = vmatpush1.msra.mxu0 0.0
    %1362 = vmatprep.subr.mxu0 0.0
    %1363 = vmatpush1.msra.mxu0 0.0
    %1364 = vmatprep.subr.mxu0 0.0
    %1365 = vmatpush1.msra.mxu0 0.0
    %1366 = vmatprep.subr.mxu0 0.0
    %1367 = vmatpush1.msra.mxu0 0.0
    %1368 = vmatprep.mubr.f32.mxu0 0.0
    %1369 = vmatmul.mubr.f32.gmra.mrb[0].mxu0 %v1302
    %v1370 = vpop.f32.mrb[0].mxu0
    %v1371 = vadd.f32 0.0, %v1370
    %v1372 = vpop.f32.mrb[0].mxu0
    %1373 = vdwg.mxu0
    %s1374 = scalar_lea.vmem [#allocation2], 40
    %v1375 = vld [vmem:[%s1374] sm:$0xff]
    %1376 = vmatprep.subr.mxu0 0.0
    %1377 = vmatpush1.msra.mxu0 %v19
    %1378 = vmatprep.subr.mxu0 0.0
    %1379 = vmatpush1.msra.mxu0 0.0
    %1380 = vmatprep.subr.mxu0 0.0
    %1381 = vmatpush1.msra.mxu0 0.0
    %1382 = vmatprep.subr.mxu0 0.0
    %1383 = vmatpush1.msra.mxu0 0.0
    %1384 = vmatprep.subr.mxu0 0.0
    %1385 = vmatpush1.msra.mxu0 0.0
    %1386 = vmatprep.subr.mxu0 0.0
    %1387 = vmatpush1.msra.mxu0 0.0
    %1388 = vmatprep.subr.mxu0 0.0
    %1389 = vmatpush1.msra.mxu0 0.0
    %1390 = vmatprep.subr.mxu0 0.0
    %1391 = vmatpush1.msra.mxu0 0.0
    %1392 = vmatprep.subr.mxu0 0.0
    %1393 = vmatpush1.msra.mxu0 0.0
    %1394 = vmatprep.subr.mxu0 0.0
    %1395 = vmatpush1.msra.mxu0 0.0
    %1396 = vmatprep.subr.mxu0 0.0
    %1397 = vmatpush1.msra.mxu0 0.0
    %1398 = vmatprep.subr.mxu0 0.0
    %1399 = vmatpush1.msra.mxu0 0.0
    %1400 = vmatprep.subr.mxu0 0.0
    %1401 = vmatpush1.msra.mxu0 0.0
    %1402 = vmatprep.subr.mxu0 0.0
    %1403 = vmatpush1.msra.mxu0 0.0
    %1404 = vmatprep.subr.mxu0 0.0
    %1405 = vmatpush1.msra.mxu0 0.0
    %1406 = vmatprep.subr.mxu0 0.0
    %1407 = vmatpush1.msra.mxu0 0.0
    %1408 = vmatprep.subr.mxu0 0.0
    %1409 = vmatpush1.msra.mxu0 0.0
    %1410 = vmatprep.subr.mxu0 0.0
    %1411 = vmatpush1.msra.mxu0 0.0
    %1412 = vmatprep.subr.mxu0 0.0
    %1413 = vmatpush1.msra.mxu0 0.0
    %1414 = vmatprep.subr.mxu0 0.0
    %1415 = vmatpush1.msra.mxu0 0.0
    %1416 = vmatprep.subr.mxu0 0.0
    %1417 = vmatpush1.msra.mxu0 0.0
    %1418 = vmatprep.subr.mxu0 0.0
    %1419 = vmatpush1.msra.mxu0 0.0
    %1420 = vmatprep.subr.mxu0 0.0
    %1421 = vmatpush1.msra.mxu0 0.0
    %1422 = vmatprep.subr.mxu0 0.0
    %1423 = vmatpush1.msra.mxu0 0.0
    %1424 = vmatprep.subr.mxu0 0.0
    %1425 = vmatpush1.msra.mxu0 0.0
    %1426 = vmatprep.subr.mxu0 0.0
    %1427 = vmatpush1.msra.mxu0 0.0
    %1428 = vmatprep.subr.mxu0 0.0
    %1429 = vmatpush1.msra.mxu0 0.0
    %1430 = vmatprep.subr.mxu0 0.0
    %1431 = vmatpush1.msra.mxu0 0.0
    %1432 = vmatprep.subr.mxu0 0.0
    %1433 = vmatpush1.msra.mxu0 0.0
    %1434 = vmatprep.subr.mxu0 0.0
    %1435 = vmatpush1.msra.mxu0 0.0
    %1436 = vmatprep.subr.mxu0 0.0
    %1437 = vmatpush1.msra.mxu0 0.0
    %1438 = vmatprep.subr.mxu0 0.0
    %1439 = vmatpush1.msra.mxu0 0.0
    %1440 = vmatprep.mubr.f32.mxu0 0.0
    %1441 = vmatmul.mubr.f32.gmra.mrb[0].mxu0 %v1226
    %v1442 = vpop.f32.mrb[0].mxu0
    %v1443 = vadd.f32 0.0, %v1442
    %v1444 = vpop.f32.mrb[0].mxu0
    %1445 = vdwg.mxu0
    %v1446 = vadd.f32 %v1375, %v1443
    %v1447 = vtanh.pop %v1446
    %v1449 = vsel %vm172, %v1447, 0
    %1451 = vmatprep.subr.mxu0 0.0
    %1452 = vmatpush1.msra.mxu0 %v20
    %1453 = vmatprep.subr.mxu0 0.0
    %1454 = vmatpush1.msra.mxu0 0.0
    %1455 = vmatprep.subr.mxu0 0.0
    %1456 = vmatpush1.msra.mxu0 0.0
    %1457 = vmatprep.subr.mxu0 0.0
    %1458 = vmatpush1.msra.mxu0 0.0
    %1459 = vmatprep.subr.mxu0 0.0
    %1460 = vmatpush1.msra.mxu0 0.0
    %1461 = vmatprep.subr.mxu0 0.0
    %1462 = vmatpush1.msra.mxu0 0.0
    %1463 = vmatprep.subr.mxu0 0.0
    %1464 = vmatpush1.msra.mxu0 0.0
    %1465 = vmatprep.subr.mxu0 0.0
    %1466 = vmatpush1.msra.mxu0 0.0
    %1467 = vmatprep.subr.mxu0 0.0
    %1468 = vmatpush1.msra.mxu0 0.0
    %1469 = vmatprep.subr.mxu0 0.0
    %1470 = vmatpush1.msra.mxu0 0.0
    %1471 = vmatprep.subr.mxu0 0.0
    %1472 = vmatpush1.msra.mxu0 0.0
    %1473 = vmatprep.subr.mxu0 0.0
    %1474 = vmatpush1.msra.mxu0 0.0
    %1475 = vmatprep.subr.mxu0 0.0
    %1476 = vmatpush1.msra.mxu0 0.0
    %1477 = vmatprep.subr.mxu0 0.0
    %1478 = vmatpush1.msra.mxu0 0.0
    %1479 = vmatprep.subr.mxu0 0.0
    %1480 = vmatpush1.msra.mxu0 0.0
    %1481 = vmatprep.subr.mxu0 0.0
    %1482 = vmatpush1.msra.mxu0 0.0
    %1483 = vmatprep.subr.mxu0 0.0
    %1484 = vmatpush1.msra.mxu0 0.0
    %1485 = vmatprep.subr.mxu0 0.0
    %1486 = vmatpush1.msra.mxu0 0.0
    %1487 = vmatprep.subr.mxu0 0.0
    %1488 = vmatpush1.msra.mxu0 0.0
    %1489 = vmatprep.subr.mxu0 0.0
    %1490 = vmatpush1.msra.mxu0 0.0
    %1491 = vmatprep.subr.mxu0 0.0
    %1492 = vmatpush1.msra.mxu0 0.0
    %1493 = vmatprep.subr.mxu0 0.0
    %1494 = vmatpush1.msra.mxu0 0.0
    %1495 = vmatprep.subr.mxu0 0.0
    %1496 = vmatpush1.msra.mxu0 0.0
    %1497 = vmatprep.subr.mxu0 0.0
    %1498 = vmatpush1.msra.mxu0 0.0
    %1499 = vmatprep.subr.mxu0 0.0
    %1500 = vmatpush1.msra.mxu0 0.0
    %1501 = vmatprep.subr.mxu0 0.0
    %1502 = vmatpush1.msra.mxu0 0.0
    %1503 = vmatprep.subr.mxu0 0.0
    %1504 = vmatpush1.msra.mxu0 0.0
    %1505 = vmatprep.subr.mxu0 0.0
    %1506 = vmatpush1.msra.mxu0 0.0
    %1507 = vmatprep.subr.mxu0 0.0
    %1508 = vmatpush1.msra.mxu0 0.0
    %1509 = vmatprep.subr.mxu0 0.0
    %1510 = vmatpush1.msra.mxu0 0.0
    %1511 = vmatprep.subr.mxu0 0.0
    %1512 = vmatpush1.msra.mxu0 0.0
    %1513 = vmatprep.subr.mxu0 0.0
    %1514 = vmatpush1.msra.mxu0 0.0
    %1515 = vmatprep.mubr.f32.mxu0 0.0
    %1516 = vmatmul.mubr.f32.gmra.mrb[0].mxu0 %v1449
    %v1517 = vpop.f32.mrb[0].mxu0
    %v1518 = vadd.f32 %v1371, %v1517
    %v1519 = vpop.f32.mrb[0].mxu0
    %1520 = vdwg.mxu0
    %v1521 = vadd.f32 %v1518, %v28
    %v1522 = vtanh.pop %v1521
    %1523 = vst.msk [vmem:[%s1374] sm:$0xff] %vm172, %v1522
    %v1525 = vsel %vm172, %v1522, 0
    %1527 = vmatprep.subr.mxu0 0.0
    %1528 = vmatpush1.msra.mxu0 %v21
    %1529 = vmatprep.subr.mxu0 0.0
    %1530 = vmatpush1.msra.mxu0 0.0
    %1531 = vmatprep.subr.mxu0 0.0
    %1532 = vmatpush1.msra.mxu0 0.0
    %1533 = vmatprep.subr.mxu0 0.0
    %1534 = vmatpush1.msra.mxu0 0.0
    %1535 = vmatprep.subr.mxu0 0.0
    %1536 = vmatpush1.msra.mxu0 0.0
    %1537 = vmatprep.subr.mxu0 0.0
    %1538 = vmatpush1.msra.mxu0 0.0
    %1539 = vmatprep.subr.mxu0 0.0
    %1540 = vmatpush1.msra.mxu0 0.0
    %1541 = vmatprep.subr.mxu0 0.0
    %1542 = vmatpush1.msra.mxu0 0.0
    %1543 = vmatprep.subr.mxu0 0.0
    %1544 = vmatpush1.msra.mxu0 0.0
    %1545 = vmatprep.subr.mxu0 0.0
    %1546 = vmatpush1.msra.mxu0 0.0
    %1547 = vmatprep.subr.mxu0 0.0
    %1548 = vmatpush1.msra.mxu0 0.0
    %1549 = vmatprep.subr.mxu0 0.0
    %1550 = vmatpush1.msra.mxu0 0.0
    %1551 = vmatprep.subr.mxu0 0.0
    %1552 = vmatpush1.msra.mxu0 0.0
    %1553 = vmatprep.subr.mxu0 0.0
    %1554 = vmatpush1.msra.mxu0 0.0
    %1555 = vmatprep.subr.mxu0 0.0
    %1556 = vmatpush1.msra.mxu0 0.0
    %1557 = vmatprep.subr.mxu0 0.0
    %1558 = vmatpush1.msra.mxu0 0.0
    %1559 = vmatprep.subr.mxu0 0.0
    %1560 = vmatpush1.msra.mxu0 0.0
    %1561 = vmatprep.subr.mxu0 0.0
    %1562 = vmatpush1.msra.mxu0 0.0
    %1563 = vmatprep.subr.mxu0 0.0
    %1564 = vmatpush1.msra.mxu0 0.0
    %1565 = vmatprep.subr.mxu0 0.0
    %1566 = vmatpush1.msra.mxu0 0.0
    %1567 = vmatprep.subr.mxu0 0.0
    %1568 = vmatpush1.msra.mxu0 0.0
    %1569 = vmatprep.subr.mxu0 0.0
    %1570 = vmatpush1.msra.mxu0 0.0
    %1571 = vmatprep.subr.mxu0 0.0
    %1572 = vmatpush1.msra.mxu0 0.0
    %1573 = vmatprep.subr.mxu0 0.0
    %1574 = vmatpush1.msra.mxu0 0.0
    %1575 = vmatprep.subr.mxu0 0.0
    %1576 = vmatpush1.msra.mxu0 0.0
    %1577 = vmatprep.subr.mxu0 0.0
    %1578 = vmatpush1.msra.mxu0 0.0
    %1579 = vmatprep.subr.mxu0 0.0
    %1580 = vmatpush1.msra.mxu0 0.0
    %1581 = vmatprep.subr.mxu0 0.0
    %1582 = vmatpush1.msra.mxu0 0.0
    %1583 = vmatprep.subr.mxu0 0.0
    %1584 = vmatpush1.msra.mxu0 0.0
    %1585 = vmatprep.subr.mxu0 0.0
    %1586 = vmatpush1.msra.mxu0 0.0
    %1587 = vmatprep.subr.mxu0 0.0
    %1588 = vmatpush1.msra.mxu0 0.0
    %1589 = vmatprep.subr.mxu0 0.0
    %1590 = vmatpush1.msra.mxu0 0.0
    %1591 = vmatprep.mubr.f32.mxu0 0.0
    %1592 = vmatmul.mubr.f32.gmra.mrb[0].mxu0 %v1525
    %v1593 = vpop.f32.mrb[0].mxu0
    %v1594 = vadd.f32 0.0, %v1593
    %v1595 = vpop.f32.mrb[0].mxu0
    %1596 = vdwg.mxu0
    %s1597 = scalar_lea.vmem [#allocation2], 48
    %v1598 = vld [vmem:[%s1597] sm:$0xff]
    %1599 = vmatprep.subr.mxu0 0.0
    %1600 = vmatpush1.msra.mxu0 %v19
    %1601 = vmatprep.subr.mxu0 0.0
    %1602 = vmatpush1.msra.mxu0 0.0
    %1603 = vmatprep.subr.mxu0 0.0
    %1604 = vmatpush1.msra.mxu0 0.0
    %1605 = vmatprep.subr.mxu0 0.0
    %1606 = vmatpush1.msra.mxu0 0.0
    %1607 = vmatprep.subr.mxu0 0.0
    %1608 = vmatpush1.msra.mxu0 0.0
    %1609 = vmatprep.subr.mxu0 0.0
    %1610 = vmatpush1.msra.mxu0 0.0
    %1611 = vmatprep.subr.mxu0 0.0
    %1612 = vmatpush1.msra.mxu0 0.0
    %1613 = vmatprep.subr.mxu0 0.0
    %1614 = vmatpush1.msra.mxu0 0.0
    %1615 = vmatprep.subr.mxu0 0.0
    %1616 = vmatpush1.msra.mxu0 0.0
    %1617 = vmatprep.subr.mxu0 0.0
    %1618 = vmatpush1.msra.mxu0 0.0
    %1619 = vmatprep.subr.mxu0 0.0
    %1620 = vmatpush1.msra.mxu0 0.0
    %1621 = vmatprep.subr.mxu0 0.0
    %1622 = vmatpush1.msra.mxu0 0.0
    %1623 = vmatprep.subr.mxu0 0.0
    %1624 = vmatpush1.msra.mxu0 0.0
    %1625 = vmatprep.subr.mxu0 0.0
    %1626 = vmatpush1.msra.mxu0 0.0
    %1627 = vmatprep.subr.mxu0 0.0
    %1628 = vmatpush1.msra.mxu0 0.0
    %1629 = vmatprep.subr.mxu0 0.0
    %1630 = vmatpush1.msra.mxu0 0.0
    %1631 = vmatprep.subr.mxu0 0.0
    %1632 = vmatpush1.msra.mxu0 0.0
    %1633 = vmatprep.subr.mxu0 0.0
    %1634 = vmatpush1.msra.mxu0 0.0
    %1635 = vmatprep.subr.mxu0 0.0
    %1636 = vmatpush1.msra.mxu0 0.0
    %1637 = vmatprep.subr.mxu0 0.0
    %1638 = vmatpush1.msra.mxu0 0.0
    %1639 = vmatprep.subr.mxu0 0.0
    %1640 = vmatpush1.msra.mxu0 0.0
    %1641 = vmatprep.subr.mxu0 0.0
    %1642 = vmatpush1.msra.mxu0 0.0
    %1643 = vmatprep.subr.mxu0 0.0
    %1644 = vmatpush1.msra.mxu0 0.0
    %1645 = vmatprep.subr.mxu0 0.0
    %1646 = vmatpush1.msra.mxu0 0.0
    %1647 = vmatprep.subr.mxu0 0.0
    %1648 = vmatpush1.msra.mxu0 0.0
    %1649 = vmatprep.subr.mxu0 0.0
    %1650 = vmatpush1.msra.mxu0 0.0
    %1651 = vmatprep.subr.mxu0 0.0
    %1652 = vmatpush1.msra.mxu0 0.0
    %1653 = vmatprep.subr.mxu0 0.0
    %1654 = vmatpush1.msra.mxu0 0.0
    %1655 = vmatprep.subr.mxu0 0.0
    %1656 = vmatpush1.msra.mxu0 0.0
    %1657 = vmatprep.subr.mxu0 0.0
    %1658 = vmatpush1.msra.mxu0 0.0
    %1659 = vmatprep.subr.mxu0 0.0
    %1660 = vmatpush1.msra.mxu0 0.0
    %1661 = vmatprep.subr.mxu0 0.0
    %1662 = vmatpush1.msra.mxu0 0.0
    %1663 = vmatprep.mubr.f32.mxu0 0.0
    %1664 = vmatmul.mubr.f32.gmra.mrb[0].mxu0 %v1449
    %v1665 = vpop.f32.mrb[0].mxu0
    %v1666 = vadd.f32 0.0, %v1665
    %v1667 = vpop.f32.mrb[0].mxu0
    %1668 = vdwg.mxu0
    %v1669 = vadd.f32 %v1598, %v1666
    %v1670 = vtanh.pop %v1669
    %v1672 = vsel %vm172, %v1670, 0
    %1674 = vmatprep.subr.mxu0 0.0
    %1675 = vmatpush1.msra.mxu0 %v20
    %1676 = vmatprep.subr.mxu0 0.0
    %1677 = vmatpush1.msra.mxu0 0.0
    %1678 = vmatprep.subr.mxu0 0.0
    %1679 = vmatpush1.msra.mxu0 0.0
    %1680 = vmatprep.subr.mxu0 0.0
    %1681 = vmatpush1.msra.mxu0 0.0
    %1682 = vmatprep.subr.mxu0 0.0
    %1683 = vmatpush1.msra.mxu0 0.0
    %1684 = vmatprep.subr.mxu0 0.0
    %1685 = vmatpush1.msra.mxu0 0.0
    %1686 = vmatprep.subr.mxu0 0.0
    %1687 = vmatpush1.msra.mxu0 0.0
    %1688 = vmatprep.subr.mxu0 0.0
    %1689 = vmatpush1.msra.mxu0 0.0
    %1690 = vmatprep.subr.mxu0 0.0
    %1691 = vmatpush1.msra.mxu0 0.0
    %1692 = vmatprep.subr.mxu0 0.0
    %1693 = vmatpush1.msra.mxu0 0.0
    %1694 = vmatprep.subr.mxu0 0.0
    %1695 = vmatpush1.msra.mxu0 0.0
    %1696 = vmatprep.subr.mxu0 0.0
    %1697 = vmatpush1.msra.mxu0 0.0
    %1698 = vmatprep.subr.mxu0 0.0
    %1699 = vmatpush1.msra.mxu0 0.0
    %1700 = vmatprep.subr.mxu0 0.0
    %1701 = vmatpush1.msra.mxu0 0.0
    %1702 = vmatprep.subr.mxu0 0.0
    %1703 = vmatpush1.msra.mxu0 0.0
    %1704 = vmatprep.subr.mxu0 0.0
    %1705 = vmatpush1.msra.mxu0 0.0
    %1706 = vmatprep.subr.mxu0 0.0
    %1707 = vmatpush1.msra.mxu0 0.0
    %1708 = vmatprep.subr.mxu0 0.0
    %1709 = vmatpush1.msra.mxu0 0.0
    %1710 = vmatprep.subr.mxu0 0.0
    %1711 = vmatpush1.msra.mxu0 0.0
    %1712 = vmatprep.subr.mxu0 0.0
    %1713 = vmatpush1.msra.mxu0 0.0
    %1714 = vmatprep.subr.mxu0 0.0
    %1715 = vmatpush1.msra.mxu0 0.0
    %1716 = vmatprep.subr.mxu0 0.0
    %1717 = vmatpush1.msra.mxu0 0.0
    %1718 = vmatprep.subr.mxu0 0.0
    %1719 = vmatpush1.msra.mxu0 0.0
    %1720 = vmatprep.subr.mxu0 0.0
    %1721 = vmatpush1.msra.mxu0 0.0
    %1722 = vmatprep.subr.mxu0 0.0
    %1723 = vmatpush1.msra.mxu0 0.0
    %1724 = vmatprep.subr.mxu0 0.0
    %1725 = vmatpush1.msra.mxu0 0.0
    %1726 = vmatprep.subr.mxu0 0.0
    %1727 = vmatpush1.msra.mxu0 0.0
    %1728 = vmatprep.subr.mxu0 0.0
    %1729 = vmatpush1.msra.mxu0 0.0
    %1730 = vmatprep.subr.mxu0 0.0
    %1731 = vmatpush1.msra.mxu0 0.0
    %1732 = vmatprep.subr.mxu0 0.0
    %1733 = vmatpush1.msra.mxu0 0.0
    %1734 = vmatprep.subr.mxu0 0.0
    %1735 = vmatpush1.msra.mxu0 0.0
    %1736 = vmatprep.subr.mxu0 0.0
    %1737 = vmatpush1.msra.mxu0 0.0
    %1738 = vmatprep.mubr.f32.mxu0 0.0
    %1739 = vmatmul.mubr.f32.gmra.mrb[0].mxu0 %v1672
    %v1740 = vpop.f32.mrb[0].mxu0
    %v1741 = vadd.f32 %v1594, %v1740
    %v1742 = vpop.f32.mrb[0].mxu0
    %1743 = vdwg.mxu0
    %v1744 = vadd.f32 %v1741, %v28
    %v1745 = vtanh.pop %v1744
    %1746 = vst.msk [vmem:[%s1597] sm:$0xff] %vm172, %v1745
    %v1748 = vsel %vm172, %v1745, 0
    %1750 = vmatprep.subr.mxu0 0.0
    %1751 = vmatpush1.msra.mxu0 %v21
    %1752 = vmatprep.subr.mxu0 0.0
    %1753 = vmatpush1.msra.mxu0 0.0
    %1754 = vmatprep.subr.mxu0 0.0
    %1755 = vmatpush1.msra.mxu0 0.0
    %1756 = vmatprep.subr.mxu0 0.0
    %1757 = vmatpush1.msra.mxu0 0.0
    %1758 = vmatprep.subr.mxu0 0.0
    %1759 = vmatpush1.msra.mxu0 0.0
    %1760 = vmatprep.subr.mxu0 0.0
    %1761 = vmatpush1.msra.mxu0 0.0
    %1762 = vmatprep.subr.mxu0 0.0
    %1763 = vmatpush1.msra.mxu0 0.0
    %1764 = vmatprep.subr.mxu0 0.0
    %1765 = vmatpush1.msra.mxu0 0.0
    %1766 = vmatprep.subr.mxu0 0.0
    %1767 = vmatpush1.msra.mxu0 0.0
    %1768 = vmatprep.subr.mxu0 0.0
    %1769 = vmatpush1.msra.mxu0 0.0
    %1770 = vmatprep.subr.mxu0 0.0
    %1771 = vmatpush1.msra.mxu0 0.0
    %1772 = vmatprep.subr.mxu0 0.0
    %1773 = vmatpush1.msra.mxu0 0.0
    %1774 = vmatprep.subr.mxu0 0.0
    %1775 = vmatpush1.msra.mxu0 0.0
    %1776 = vmatprep.subr.mxu0 0.0
    %1777 = vmatpush1.msra.mxu0 0.0
    %1778 = vmatprep.subr.mxu0 0.0
    %1779 = vmatpush1.msra.mxu0 0.0
    %1780 = vmatprep.subr.mxu0 0.0
    %1781 = vmatpush1.msra.mxu0 0.0
    %1782 = vmatprep.subr.mxu0 0.0
    %1783 = vmatpush1.msra.mxu0 0.0
    %1784 = vmatprep.subr.mxu0 0.0
    %1785 = vmatpush1.msra.mxu0 0.0
    %1786 = vmatprep.subr.mxu0 0.0
    %1787 = vmatpush1.msra.mxu0 0.0
    %1788 = vmatprep.subr.mxu0 0.0
    %1789 = vmatpush1.msra.mxu0 0.0
    %1790 = vmatprep.subr.mxu0 0.0
    %1791 = vmatpush1.msra.mxu0 0.0
    %1792 = vmatprep.subr.mxu0 0.0
    %1793 = vmatpush1.msra.mxu0 0.0
    %1794 = vmatprep.subr.mxu0 0.0
    %1795 = vmatpush1.msra.mxu0 0.0
    %1796 = vmatprep.subr.mxu0 0.0
    %1797 = vmatpush1.msra.mxu0 0.0
    %1798 = vmatprep.subr.mxu0 0.0
    %1799 = vmatpush1.msra.mxu0 0.0
    %1800 = vmatprep.subr.mxu0 0.0
    %1801 = vmatpush1.msra.mxu0 0.0
    %1802 = vmatprep.subr.mxu0 0.0
    %1803 = vmatpush1.msra.mxu0 0.0
    %1804 = vmatprep.subr.mxu0 0.0
    %1805 = vmatpush1.msra.mxu0 0.0
    %1806 = vmatprep.subr.mxu0 0.0
    %1807 = vmatpush1.msra.mxu0 0.0
    %1808 = vmatprep.subr.mxu0 0.0
    %1809 = vmatpush1.msra.mxu0 0.0
    %1810 = vmatprep.subr.mxu0 0.0
    %1811 = vmatpush1.msra.mxu0 0.0
    %1812 = vmatprep.subr.mxu0 0.0
    %1813 = vmatpush1.msra.mxu0 0.0
    %1814 = vmatprep.mubr.f32.mxu0 0.0
    %1815 = vmatmul.mubr.f32.gmra.mrb[0].mxu0 %v1748
    %v1816 = vpop.f32.mrb[0].mxu0
    %v1817 = vadd.f32 0.0, %v1816
    %v1818 = vpop.f32.mrb[0].mxu0
    %1819 = vdwg.mxu0
    %s1820 = scalar_lea.vmem [#allocation2], 56
    %v1821 = vld [vmem:[%s1820] sm:$0xff]
    %1822 = vmatprep.subr.mxu0 0.0
    %1823 = vmatpush1.msra.mxu0 %v19
    %1824 = vmatprep.subr.mxu0 0.0
    %1825 = vmatpush1.msra.mxu0 0.0
    %1826 = vmatprep.subr.mxu0 0.0
    %1827 = vmatpush1.msra.mxu0 0.0
    %1828 = vmatprep.subr.mxu0 0.0
    %1829 = vmatpush1.msra.mxu0 0.0
    %1830 = vmatprep.subr.mxu0 0.0
    %1831 = vmatpush1.msra.mxu0 0.0
    %1832 = vmatprep.subr.mxu0 0.0
    %1833 = vmatpush1.msra.mxu0 0.0
    %1834 = vmatprep.subr.mxu0 0.0
    %1835 = vmatpush1.msra.mxu0 0.0
    %1836 = vmatprep.subr.mxu0 0.0
    %1837 = vmatpush1.msra.mxu0 0.0
    %1838 = vmatprep.subr.mxu0 0.0
    %1839 = vmatpush1.msra.mxu0 0.0
    %1840 = vmatprep.subr.mxu0 0.0
    %1841 = vmatpush1.msra.mxu0 0.0
    %1842 = vmatprep.subr.mxu0 0.0
    %1843 = vmatpush1.msra.mxu0 0.0
    %1844 = vmatprep.subr.mxu0 0.0
    %1845 = vmatpush1.msra.mxu0 0.0
    %1846 = vmatprep.subr.mxu0 0.0
    %1847 = vmatpush1.msra.mxu0 0.0
    %1848 = vmatprep.subr.mxu0 0.0
    %1849 = vmatpush1.msra.mxu0 0.0
    %1850 = vmatprep.subr.mxu0 0.0
    %1851 = vmatpush1.msra.mxu0 0.0
    %1852 = vmatprep.subr.mxu0 0.0
    %1853 = vmatpush1.msra.mxu0 0.0
    %1854 = vmatprep.subr.mxu0 0.0
    %1855 = vmatpush1.msra.mxu0 0.0
    %1856 = vmatprep.subr.mxu0 0.0
    %1857 = vmatpush1.msra.mxu0 0.0
    %1858 = vmatprep.subr.mxu0 0.0
    %1859 = vmatpush1.msra.mxu0 0.0
    %1860 = vmatprep.subr.mxu0 0.0
    %1861 = vmatpush1.msra.mxu0 0.0
    %1862 = vmatprep.subr.mxu0 0.0
    %1863 = vmatpush1.msra.mxu0 0.0
    %1864 = vmatprep.subr.mxu0 0.0
    %1865 = vmatpush1.msra.mxu0 0.0
    %1866 = vmatprep.subr.mxu0 0.0
    %1867 = vmatpush1.msra.mxu0 0.0
    %1868 = vmatprep.subr.mxu0 0.0
    %1869 = vmatpush1.msra.mxu0 0.0
    %1870 = vmatprep.subr.mxu0 0.0
    %1871 = vmatpush1.msra.mxu0 0.0
    %1872 = vmatprep.subr.mxu0 0.0
    %1873 = vmatpush1.msra.mxu0 0.0
    %1874 = vmatprep.subr.mxu0 0.0
    %1875 = vmatpush1.msra.mxu0 0.0
    %1876 = vmatprep.subr.mxu0 0.0
    %1877 = vmatpush1.msra.mxu0 0.0
    %1878 = vmatprep.subr.mxu0 0.0
    %1879 = vmatpush1.msra.mxu0 0.0
    %1880 = vmatprep.subr.mxu0 0.0
    %1881 = vmatpush1.msra.mxu0 0.0
    %1882 = vmatprep.subr.mxu0 0.0
    %1883 = vmatpush1.msra.mxu0 0.0
    %1884 = vmatprep.subr.mxu0 0.0
    %1885 = vmatpush1.msra.mxu0 0.0
    %1886 = vmatprep.mubr.f32.mxu0 0.0
    %1887 = vmatmul.mubr.f32.gmra.mrb[0].mxu0 %v1672
    %v1888 = vpop.f32.mrb[0].mxu0
    %v1889 = vadd.f32 0.0, %v1888
    %v1890 = vpop.f32.mrb[0].mxu0
    %1891 = vdwg.mxu0
    %v1892 = vadd.f32 %v1821, %v1889
    %v1893 = vtanh.pop %v1892
    %v1895 = vsel %vm172, %v1893, 0
    %1897 = vmatprep.subr.mxu0 0.0
    %1898 = vmatpush1.msra.mxu0 %v20
    %1899 = vmatprep.subr.mxu0 0.0
    %1900 = vmatpush1.msra.mxu0 0.0
    %1901 = vmatprep.subr.mxu0 0.0
    %1902 = vmatpush1.msra.mxu0 0.0
    %1903 = vmatprep.subr.mxu0 0.0
    %1904 = vmatpush1.msra.mxu0 0.0
    %1905 = vmatprep.subr.mxu0 0.0
    %1906 = vmatpush1.msra.mxu0 0.0
    %1907 = vmatprep.subr.mxu0 0.0
    %1908 = vmatpush1.msra.mxu0 0.0
    %1909 = vmatprep.subr.mxu0 0.0
    %1910 = vmatpush1.msra.mxu0 0.0
    %1911 = vmatprep.subr.mxu0 0.0
    %1912 = vmatpush1.msra.mxu0 0.0
    %1913 = vmatprep.subr.mxu0 0.0
    %1914 = vmatpush1.msra.mxu0 0.0
    %1915 = vmatprep.subr.mxu0 0.0
    %1916 = vmatpush1.msra.mxu0 0.0
    %1917 = vmatprep.subr.mxu0 0.0
    %1918 = vmatpush1.msra.mxu0 0.0
    %1919 = vmatprep.subr.mxu0 0.0
    %1920 = vmatpush1.msra.mxu0 0.0
    %1921 = vmatprep.subr.mxu0 0.0
    %1922 = vmatpush1.msra.mxu0 0.0
    %1923 = vmatprep.subr.mxu0 0.0
    %1924 = vmatpush1.msra.mxu0 0.0
    %1925 = vmatprep.subr.mxu0 0.0
    %1926 = vmatpush1.msra.mxu0 0.0
    %1927 = vmatprep.subr.mxu0 0.0
    %1928 = vmatpush1.msra.mxu0 0.0
    %1929 = vmatprep.subr.mxu0 0.0
    %1930 = vmatpush1.msra.mxu0 0.0
    %1931 = vmatprep.subr.mxu0 0.0
    %1932 = vmatpush1.msra.mxu0 0.0
    %1933 = vmatprep.subr.mxu0 0.0
    %1934 = vmatpush1.msra.mxu0 0.0
    %1935 = vmatprep.subr.mxu0 0.0
    %1936 = vmatpush1.msra.mxu0 0.0
    %1937 = vmatprep.subr.mxu0 0.0
    %1938 = vmatpush1.msra.mxu0 0.0
    %1939 = vmatprep.subr.mxu0 0.0
    %1940 = vmatpush1.msra.mxu0 0.0
    %1941 = vmatprep.subr.mxu0 0.0
    %1942 = vmatpush1.msra.mxu0 0.0
    %1943 = vmatprep.subr.mxu0 0.0
    %1944 = vmatpush1.msra.mxu0 0.0
    %1945 = vmatprep.subr.mxu0 0.0
    %1946 = vmatpush1.msra.mxu0 0.0
    %1947 = vmatprep.subr.mxu0 0.0
    %1948 = vmatpush1.msra.mxu0 0.0
    %1949 = vmatprep.subr.mxu0 0.0
    %1950 = vmatpush1.msra.mxu0 0.0
    %1951 = vmatprep.subr.mxu0 0.0
    %1952 = vmatpush1.msra.mxu0 0.0
    %1953 = vmatprep.subr.mxu0 0.0
    %1954 = vmatpush1.msra.mxu0 0.0
    %1955 = vmatprep.subr.mxu0 0.0
    %1956 = vmatpush1.msra.mxu0 0.0
    %1957 = vmatprep.subr.mxu0 0.0
    %1958 = vmatpush1.msra.mxu0 0.0
    %1959 = vmatprep.subr.mxu0 0.0
    %1960 = vmatpush1.msra.mxu0 0.0
    %1961 = vmatprep.mubr.f32.mxu0 0.0
    %1962 = vmatmul.mubr.f32.gmra.mrb[0].mxu0 %v1895
    %v1963 = vpop.f32.mrb[0].mxu0
    %v1964 = vadd.f32 %v1817, %v1963
    %v1965 = vpop.f32.mrb[0].mxu0
    %1966 = vdwg.mxu0
    %v1967 = vadd.f32 %v1964, %v28
    %v1968 = vtanh.pop %v1967
    %1969 = vst.msk [vmem:[%s1820] sm:$0xff] %vm172, %v1968
    %v1970 = vld [vmem:[#allocation2] sm:$0xff]
    %v1971 = vld [vmem:[#allocation2 + $0x8] sm:$0xff]
    %v1972 = vld [vmem:[#allocation2 + $0x10] sm:$0xff]
    %v1973 = vld [vmem:[#allocation2 + $0x18] sm:$0xff]
    %v1974 = vld [vmem:[#allocation2 + $0x20] sm:$0xff]
    %v1975 = vld [vmem:[#allocation2 + $0x28] sm:$0xff]
    %v1976 = vld [vmem:[#allocation2 + $0x30] sm:$0xff]
    %v1977 = vld [vmem:[#allocation2 + $0x38] sm:$0xff]
    %v1978 = vlaneseq
    %v1979 = vshrl.u32 %v1978, 7
    %v1980 = vsub.s32 0, %v1979
    %v1981 = vrot.slane %v29, %v1980
    %v1983 = vsel %vm172, %v1970, 0
    %v1986 = vsel %vm172, %v1971, 0
    %v1989 = vsel %vm172, %v1972, 0
    %v1992 = vsel %vm172, %v1973, 0
    %v1995 = vsel %vm172, %v1974, 0
    %v1998 = vsel %vm172, %v1975, 0
    %v2001 = vsel %vm172, %v1976, 0
    %v2004 = vsel %vm172, %v1977, 0
    %2006 = vmatprep.subr.mxu0 0.0
    %2007 = vmatpush1.msra.mxu0 %v22
    %2008 = vmatprep.subr.mxu0 0.0
    %2009 = vmatpush1.msra.mxu0 0.0
    %2010 = vmatprep.subr.mxu0 0.0
    %2011 = vmatpush1.msra.mxu0 0.0
    %2012 = vmatprep.subr.mxu0 0.0
    %2013 = vmatpush1.msra.mxu0 0.0
    %2014 = vmatprep.subr.mxu0 0.0
    %2015 = vmatpush1.msra.mxu0 0.0
    %2016 = vmatprep.subr.mxu0 0.0
    %2017 = vmatpush1.msra.mxu0 0.0
    %2018 = vmatprep.subr.mxu0 0.0
    %2019 = vmatpush1.msra.mxu0 0.0
    %2020 = vmatprep.subr.mxu0 0.0
    %2021 = vmatpush1.msra.mxu0 0.0
    %2022 = vmatprep.subr.mxu0 0.0
    %2023 = vmatpush1.msra.mxu0 0.0
    %2024 = vmatprep.subr.mxu0 0.0
    %2025 = vmatpush1.msra.mxu0 0.0
    %2026 = vmatprep.subr.mxu0 0.0
    %2027 = vmatpush1.msra.mxu0 0.0
    %2028 = vmatprep.subr.mxu0 0.0
    %2029 = vmatpush1.msra.mxu0 0.0
    %2030 = vmatprep.subr.mxu0 0.0
    %2031 = vmatpush1.msra.mxu0 0.0
    %2032 = vmatprep.subr.mxu0 0.0
    %2033 = vmatpush1.msra.mxu0 0.0
    %2034 = vmatprep.subr.mxu0 0.0
    %2035 = vmatpush1.msra.mxu0 0.0
    %2036 = vmatprep.subr.mxu0 0.0
    %2037 = vmatpush1.msra.mxu0 0.0
    %2038 = vmatprep.subr.mxu0 0.0
    %2039 = vmatpush1.msra.mxu0 0.0
    %2040 = vmatprep.subr.mxu0 0.0
    %2041 = vmatpush1.msra.mxu0 0.0
    %2042 = vmatprep.subr.mxu0 0.0
    %2043 = vmatpush1.msra.mxu0 0.0
    %2044 = vmatprep.subr.mxu0 0.0
    %2045 = vmatpush1.msra.mxu0 0.0
    %2046 = vmatprep.subr.mxu0 0.0
    %2047 = vmatpush1.msra.mxu0 0.0
    %2048 = vmatprep.subr.mxu0 0.0
    %2049 = vmatpush1.msra.mxu0 0.0
    %2050 = vmatprep.subr.mxu0 0.0
    %2051 = vmatpush1.msra.mxu0 0.0
    %2052 = vmatprep.subr.mxu0 0.0
    %2053 = vmatpush1.msra.mxu0 0.0
    %2054 = vmatprep.subr.mxu0 0.0
    %2055 = vmatpush1.msra.mxu0 0.0
    %2056 = vmatprep.subr.mxu0 0.0
    %2057 = vmatpush1.msra.mxu0 0.0
    %2058 = vmatprep.subr.mxu0 0.0
    %2059 = vmatpush1.msra.mxu0 0.0
    %2060 = vmatprep.subr.mxu0 0.0
    %2061 = vmatpush1.msra.mxu0 0.0
    %2062 = vmatprep.subr.mxu0 0.0
    %2063 = vmatpush1.msra.mxu0 0.0
    %2064 = vmatprep.subr.mxu0 0.0
    %2065 = vmatpush1.msra.mxu0 0.0
    %2066 = vmatprep.subr.mxu0 0.0
    %2067 = vmatpush1.msra.mxu0 0.0
    %2068 = vmatprep.subr.mxu0 0.0
    %2069 = vmatpush1.msra.mxu0 0.0
    %2070 = vmatprep.mubr.f32.mxu0 0.0
    %2071 = vmatmul.mubr.f32.gmra.mrb[0].mxu0 %v1983
    %v2072 = vpop.f32.mrb[0].mxu0
    %v2073 = vadd.f32 %v1981, %v2072
    %v2074 = vpop.f32.mrb[0].mxu0
    %2075 = vmatprep.mubr.f32.mxu0 0.0
    %2076 = vmatmul.mubr.f32.gmra.mrb[0].mxu0 %v1986
    %v2077 = vpop.f32.mrb[0].mxu0
    %v2078 = vadd.f32 %v1981, %v2077
    %v2079 = vpop.f32.mrb[0].mxu0
    %2080 = vmatprep.mubr.f32.mxu0 0.0
    %2081 = vmatmul.mubr.f32.gmra.mrb[0].mxu0 %v1989
    %v2082 = vpop.f32.mrb[0].mxu0
    %v2083 = vadd.f32 %v1981, %v2082
    %v2084 = vpop.f32.mrb[0].mxu0
    %2085 = vmatprep.mubr.f32.mxu0 0.0
    %2086 = vmatmul.mubr.f32.gmra.mrb[0].mxu0 %v1992
    %v2087 = vpop.f32.mrb[0].mxu0
    %v2088 = vadd.f32 %v1981, %v2087
    %v2089 = vpop.f32.mrb[0].mxu0
    %2090 = vmatprep.mubr.f32.mxu0 0.0
    %2091 = vmatmul.mubr.f32.gmra.mrb[0].mxu0 %v1995
    %v2092 = vpop.f32.mrb[0].mxu0
    %v2093 = vadd.f32 %v1981, %v2092
    %v2094 = vpop.f32.mrb[0].mxu0
    %2095 = vmatprep.mubr.f32.mxu0 0.0
    %2096 = vmatmul.mubr.f32.gmra.mrb[0].mxu0 %v1998
    %v2097 = vpop.f32.mrb[0].mxu0
    %v2098 = vadd.f32 %v1981, %v2097
    %v2099 = vpop.f32.mrb[0].mxu0
    %2100 = vmatprep.mubr.f32.mxu0 0.0
    %2101 = vmatmul.mubr.f32.gmra.mrb[0].mxu0 %v2001
    %v2102 = vpop.f32.mrb[0].mxu0
    %v2103 = vadd.f32 %v1981, %v2102
    %v2104 = vpop.f32.mrb[0].mxu0
    %2105 = vmatprep.mubr.f32.mxu0 0.0
    %2106 = vmatmul.mubr.f32.gmra.mrb[0].mxu0 %v2004
    %v2107 = vpop.f32.mrb[0].mxu0
    %v2108 = vadd.f32 %v1981, %v2107
    %v2109 = vpop.f32.mrb[0].mxu0
    %2110 = vdwg.mxu0
    %2111 = vst.msk [vmem:[%s3] sm:$0xff] %vm172, %v2073
    %2112 = vst.msk [vmem:[%s3 + $0x8] sm:$0xff] %vm172, %v2078
    %2113 = vst.msk [vmem:[%s3 + $0x10] sm:$0xff] %vm172, %v2083
    %2114 = vst.msk [vmem:[%s3 + $0x18] sm:$0xff] %vm172, %v2088
    %2115 = vst.msk [vmem:[%s3 + $0x20] sm:$0xff] %vm172, %v2093
    %2116 = vst.msk [vmem:[%s3 + $0x28] sm:$0xff] %vm172, %v2098
    %2117 = vst.msk [vmem:[%s3 + $0x30] sm:$0xff] %vm172, %v2103
    %2118 = vst.msk [vmem:[%s3 + $0x38] sm:$0xff] %vm172, %v2108
    %2119 = vst.msk [vmem:[#allocation3] sm:$0xff] %vm172, %v1893
    %s2120 = scalar_lea.vmem [#allocation3], 8
    %2121 = vst.msk [vmem:[%s2120] sm:$0xff] %vm172, %v1968
    // Predicated region
    $region14: #{tpu_custom_call.1} parent=1 // pred_check
      _
    $region15: #{tpu_custom_call.1} parent=1 // pred_check_branch
      %2123 = sbr.rel (0) target = $region17
    $region16: #{tpu_custom_call.1} parent=1 // pred_region
      _
    $region17: #{tpu_custom_call.1} parent=1 // pred_fallthru
      _
    // Predicated region
    $region18: #{tpu_custom_call.1} parent=1 // pred_check
      _
    $region19: #{tpu_custom_call.1} parent=1 // pred_check_branch
      %2125 = sbr.rel (0) target = $region21
    $region20: #{tpu_custom_call.1} parent=1 // pred_region
      %s2127 = ssub.s32 256, 256
      %2128 = vsyncadd [#allocation4], %s2127
      %s2129 = sshll.u32 [#allocation3], 4
      %s2130 = int_to_ptr.vmem [resolvable:$true] %s2129
      %2135 = dma.vmem_to_hbm [thread:$0]  %s2130, 256, %s4, [#allocation4], 128, 128, 8
    $region21: #{tpu_custom_call.1} parent=1 // pred_fallthru
      _
    // Predicated region
    $region22: #{tpu_custom_call.1} parent=1 // pred_check
      _
    $region23: #{tpu_custom_call.1} parent=1 // pred_check_branch
      %2137 = sbr.rel (0) target = $region25
    $region24: #{tpu_custom_call.1} parent=1 // pred_region
      _
    $region25: #{tpu_custom_call.1} parent=1 // pred_fallthru
      _
    // Predicated region
    $region26: #{tpu_custom_call.1} parent=1 // pred_check
      _
    $region27: #{tpu_custom_call.1} parent=1 // pred_check_branch
      %2139 = sbr.rel (0) target = $region29
    $region28: #{tpu_custom_call.1} parent=1 // pred_region
      %2140 = dma.done [#allocation4], 256
    $region29: #{tpu_custom_call.1} parent=1 // pred_fallthru
      _
    %2141 = vsyncpa [#allocation4], 1

</llo_original>
